<compile_context>
chip_gen: v7x
topology: tpu7x:2x2x1
jax: 0.10.0
libtpu: 0.0.40
codegen_flags: <defaults>
</compile_context>

<pallas_src>
import functools

import jax
import jax.numpy as jnp
from jax import lax
from jax.experimental import pallas as pl
from jax.experimental.pallas import tpu as pltpu

H_PAD = 128      # lane-dense hidden width (real hidden dim is zero-padded up to this)
_SUBLANE = 8


def _round_up(x, m):
    return ((x + m - 1) // m) * m


def _pad2d(a, rows, cols):
    out = jnp.zeros((rows, cols), a.dtype)
    return out.at[: a.shape[0], : a.shape[1]].set(a)


# ----------------------------------------------------------------------------
# Fused forward kernel
# ----------------------------------------------------------------------------

def _fused_gnn_kernel(
    # inputs
    src_ref, dst_ref,              # SMEM int32 [E]
    x_ref,                         # [N_pad, D_pad]
    emb_w_ref, emb_b_ref,          # [D_pad, H_PAD], [1, H_PAD]
    gnn_w_ref, gnn_b_ref,          # [L, H_PAD, H_PAD], [L, H_PAD]
    mw1s_ref, mw1d_ref, mb1_ref,   # mask MLP layer 1 (src / dst halves of W1)
    mw2_ref, mb2_ref,              # mask MLP layer 2, replicated across lanes
    pw1_ref, pb1_ref,              # predictor layer 1
    pw2_ref, pb2_ref,              # predictor layer 2, replicated across lanes
    # outputs
    emb_ref,                       # [N_pad, H_PAD]   (also the working buffer)
    mask_ref,                      # [E_pad, H_PAD]   (mask broadcast across lanes)
    pred_ref,                      # [1, H_PAD]       (prediction replicated)
    # scratch
    src_e, dst_e, msgs,
    *, num_layers, num_edges):

    f32 = jnp.float32

    # node embedding: relu(x @ We + be)   (Dropout = identity in eval mode)
    emb_ref[...] = jnp.maximum(
        jnp.dot(x_ref[...], emb_w_ref[...], preferred_element_type=f32)
        + emb_b_ref[...], 0.0)

    # zero the gather scratch once so padded edge rows stay exactly zero
    src_e[...] = jnp.zeros_like(src_e)
    dst_e[...] = jnp.zeros_like(dst_e)

    # hoist small broadcast operands out of the unrolled layer loop
    mb1 = mb1_ref[...]
    mb2 = mb2_ref[...]

    def gather_edges():
        # index-based gather (replaces the O(E*N*H) one-hot matmuls):
        #   src_e[j] = emb[src[j]] ; dst_e[j] = emb[dst[j]]
        def body(j, carry):
            s = src_ref[j]
            d = dst_ref[j]
            src_e[pl.ds(j, 1), :] = emb_ref[pl.ds(s, 1), :]
            dst_e[pl.ds(j, 1), :] = emb_ref[pl.ds(d, 1), :]
            return carry
        lax.fori_loop(0, num_edges, body, 0)

    def compute_mask():
        # concat([src, dst]) @ W1  ==  src @ W1[:H] + dst @ W1[H:]
        h = jnp.maximum(
            jnp.dot(src_e[...], mw1s_ref[...], preferred_element_type=f32)
            + jnp.dot(dst_e[...], mw1d_ref[...], preferred_element_type=f32)
            + mb1, 0.0)
        # W2 / b2 are replicated across all H_PAD lanes, so `imp` is the per-edge
        # importance already broadcast over the hidden dim (lane-dense; no [E,1]).
        imp = jax.nn.sigmoid(
            jnp.dot(h, mw2_ref[...], preferred_element_type=f32) + mb2)
        # eval mode: temperature = 1.0, offset = 0.5 (sigmoid-of-sigmoid per spec).
        mask_ref[...] = jax.nn.sigmoid(imp - 0.5)

    gather_edges()
    compute_mask()

    for i in range(num_layers):
        # per-edge weighted message; src_e is re-gathered (or dead) after this,
        # so the multiply can be done in place — the gather is reused between the
        # mask MLP and the message passing.
        src_e[...] = src_e[...] * mask_ref[...]

        # scatter-add: messages[dst[j]] += emb[src[j]] * mask[j]
        # sequential read-modify-write -> duplicate destinations accumulate
        # exactly like the PyTorch per-edge loop.
        msgs[...] = jnp.zeros_like(msgs)

        def scatter(j, carry):
            d = dst_ref[j]
            msgs[pl.ds(d, 1), :] = msgs[pl.ds(d, 1), :] + src_e[pl.ds(j, 1), :]
            return carry
        lax.fori_loop(0, num_edges, scatter, 0)

        # GNN layer i: relu((emb + msgs) @ Wg[i] + bg[i])
        emb_ref[...] = jnp.maximum(
            jnp.dot(emb_ref[...] + msgs[...], gnn_w_ref[i],
                    preferred_element_type=f32)
            + gnn_b_ref[i:i + 1, :], 0.0)

        if i < num_layers - 1:
            gather_edges()
            compute_mask()

    # predictor on the question node (index 0) — fused, reads one VMEM row.
    q = emb_ref[0:1, :]
    ph = jnp.maximum(
        jnp.dot(q, pw1_ref[...], preferred_element_type=f32) + pb1_ref[...], 0.0)
    pred_ref[...] = (
        jnp.dot(ph, pw2_ref[...], preferred_element_type=f32) + pb2_ref[...])


# ----------------------------------------------------------------------------
# Parameter init (deterministic, synthetic) + lane-dense packing
# ----------------------------------------------------------------------------

def init_params(key, node_dim, hidden_dim, num_layers):
    keys = jax.random.split(key, 16)
    k = iter(keys)

    def lin(kk, fan_in, fan_out):
        w = jax.random.normal(kk, (fan_in, fan_out), jnp.float32) * (1.0 / jnp.sqrt(fan_in))
        b = jnp.zeros((1, fan_out), jnp.float32)
        return w, b

    params = {}
    params["emb_w"], params["emb_b"] = lin(next(k), node_dim, hidden_dim)
    params["gnn"] = [lin(next(k), hidden_dim, hidden_dim) for _ in range(num_layers)]
    params["mask_w1"], params["mask_b1"] = lin(next(k), 2 * hidden_dim, hidden_dim)
    params["mask_w2"], params["mask_b2"] = lin(next(k), hidden_dim, 1)
    params["pred_w1"], params["pred_b1"] = lin(next(k), hidden_dim, hidden_dim)
    params["pred_w2"], params["pred_b2"] = lin(next(k), hidden_dim, 1)
    # mask_temperature exists in the module but is unused in eval (temp=1.0).
    params["mask_temperature"] = jnp.array(2.0, jnp.float32)
    return params


def pack_params(params, node_dim, hidden_dim):
    """Zero-pad to lane-dense H_PAD, stack GNN layers, replicate width-1 heads."""
    H, HP = hidden_dim, H_PAD
    DP = _round_up(node_dim, 128)
    packed = {
        "emb_w": _pad2d(params["emb_w"], DP, HP),
        "emb_b": _pad2d(params["emb_b"], 1, HP),
        "gnn_w": jnp.stack([_pad2d(w, HP, HP) for (w, _) in params["gnn"]]),
        "gnn_b": jnp.stack([_pad2d(b, 1, HP)[0] for (_, b) in params["gnn"]]),
        "mask_w1s": _pad2d(params["mask_w1"][:H, :], HP, HP),
        "mask_w1d": _pad2d(params["mask_w1"][H:, :], HP, HP),
        "mask_b1": _pad2d(params["mask_b1"], 1, HP),
        # replicate the [H,1] output column across all lanes -> the mask MLP emits
        # the mask already broadcast over the hidden dim (lane-dense output).
        "mask_w2r": jnp.tile(_pad2d(params["mask_w2"], HP, 1), (1, HP)),
        "mask_b2r": jnp.tile(_pad2d(params["mask_b2"], 1, 1), (1, HP)),
        "pred_w1": _pad2d(params["pred_w1"], HP, HP),
        "pred_b1": _pad2d(params["pred_b1"], 1, HP),
        "pred_w2r": jnp.tile(_pad2d(params["pred_w2"], HP, 1), (1, HP)),
        "pred_b2r": jnp.tile(_pad2d(params["pred_b2"], 1, 1), (1, HP)),
    }
    return packed


# ----------------------------------------------------------------------------
# Forward pass (eval mode)
# ----------------------------------------------------------------------------

@functools.partial(jax.jit, static_argnames=("hidden_dim",))
def gnn_softmask_forward(packed, node_features, edge_index, *, hidden_dim):
    N, _ = node_features.shape
    E = edge_index.shape[1]
    assert E > 0  # TODO(synk): num_edges == 0 branch of the reference not needed here
    L, HP, _ = packed["gnn_w"].shape
    DP = packed["emb_w"].shape[0]
    N_pad = _round_up(max(N, 1), _SUBLANE)
    E_pad = _round_up(E, _SUBLANE)

    x_pad = _pad2d(node_features.astype(jnp.float32), N_pad, DP)
    src = edge_index[0].astype(jnp.int32)
    dst = edge_index[1].astype(jnp.int32)

    kernel = functools.partial(_fused_gnn_kernel, num_layers=L, num_edges=E)

    flops = int(
        2 * N_pad * DP * HP                     # node embedding
        + L * 2 * N_pad * HP * HP               # GNN linears
        + L * 3 * 2 * E_pad * HP * HP           # mask MLP (w1 src + w1 dst + replicated w2)
        + 2 * 2 * HP * HP                       # predictor
        + L * 4 * E_pad * HP                    # weighted messages + scatter adds
    )
    transcendentals = int(L * 2 * E_pad * HP)   # two sigmoids per mask computation
    bytes_accessed = int(
        4 * (N_pad * DP + DP * HP + HP
             + L * (HP * HP + HP)
             + 6 * HP * HP + 4 * HP             # mask + predictor weights/biases
             + N_pad * HP + E_pad * HP + HP)    # outputs
        + 4 * 2 * E)                            # int32 indices

    emb_p, mask_p, pred_p = pl.pallas_call(
        kernel,
        out_shape=(
            jax.ShapeDtypeStruct((N_pad, HP), jnp.float32),   # node embeddings
            jax.ShapeDtypeStruct((E_pad, HP), jnp.float32),   # edge masks (lane-dense)
            jax.ShapeDtypeStruct((1, HP), jnp.float32),       # prediction (replicated)
        ),
        in_specs=(
            [pl.BlockSpec(memory_space=pltpu.MemorySpace.SMEM)] * 2
            + [pl.BlockSpec(memory_space=pltpu.MemorySpace.VMEM)] * 14
        ),
        out_specs=(
            pl.BlockSpec(memory_space=pltpu.MemorySpace.VMEM),
            pl.BlockSpec(memory_space=pltpu.MemorySpace.VMEM),
            pl.BlockSpec(memory_space=pltpu.MemorySpace.VMEM),
        ),
        scratch_shapes=[
            pltpu.VMEM((E_pad, HP), jnp.float32),   # gathered src embeddings
            pltpu.VMEM((E_pad, HP), jnp.float32),   # gathered dst embeddings
            pltpu.VMEM((N_pad, HP), jnp.float32),   # message accumulator
        ],
        compiler_params=pltpu.CompilerParams(vmem_limit_bytes=32 * 1024 * 1024),
        cost_estimate=pl.CostEstimate(
            flops=flops, transcendentals=transcendentals,
            bytes_accessed=bytes_accessed),
    )(src, dst, x_pad,
      packed["emb_w"], packed["emb_b"], packed["gnn_w"], packed["gnn_b"],
      packed["mask_w1s"], packed["mask_w1d"], packed["mask_b1"],
      packed["mask_w2r"], packed["mask_b2r"],
      packed["pred_w1"], packed["pred_b1"],
      packed["pred_w2r"], packed["pred_b2r"])

    prediction = pred_p[0, :1]            # matches predictor(node_embeds[0]) -> [1]
    edge_masks = mask_p[:E, 0]            # matches .squeeze()                -> [E]
    node_embeds = emb_p[:N, :hidden_dim]  # [N, H]
    return prediction, edge_masks, node_embeds


# ----------------------------------------------------------------------------
# Demo
# ----------------------------------------------------------------------------

if __name__ == "__main__":
    NODE_DIM = 16
    HIDDEN_DIM = 32
    NUM_LAYERS = 3
    N_NODES = 8
    N_EDGES = 12

    root = jax.random.PRNGKey(0)
    k_param, k_feat, k_src, k_dst = jax.random.split(root, 4)

    params = init_params(k_param, NODE_DIM, HIDDEN_DIM, NUM_LAYERS)
    packed = pack_params(params, NODE_DIM, HIDDEN_DIM)

    node_features = jax.random.normal(k_feat, (N_NODES, NODE_DIM), jnp.float32)
    edge_index = jnp.stack(
        [
            jax.random.randint(k_src, (N_EDGES,), 0, N_NODES, dtype=jnp.int32),
            jax.random.randint(k_dst, (N_EDGES,), 0, N_NODES, dtype=jnp.int32),
        ],
        axis=0,
    )  # [2, E]

    prediction, edge_masks, node_embeds = gnn_softmask_forward(
        packed, node_features, edge_index, hidden_dim=HIDDEN_DIM
    )
    jax.block_until_ready((prediction, edge_masks, node_embeds))

    assert prediction.shape == (1,)
    assert edge_masks.shape == (N_EDGES,)
    assert node_embeds.shape == (N_NODES, HIDDEN_DIM)
    print("KERNEL_OK")
</pallas_src>

<mosaic_0001>
module attributes {stable_mosaic.version = 11 : i64} {
  func.func @_fused_gnn_kernel(%arg0: memref<12xi32, #tpu.memory_space<smem>>, %arg1: memref<12xi32, #tpu.memory_space<smem>>, %arg2: memref<8x128xf32, #tpu.memory_space<vmem>>, %arg3: memref<128x128xf32, #tpu.memory_space<vmem>>, %arg4: memref<1x128xf32, #tpu.memory_space<vmem>>, %arg5: memref<3x128x128xf32, #tpu.memory_space<vmem>>, %arg6: memref<3x128xf32, #tpu.memory_space<vmem>>, %arg7: memref<128x128xf32, #tpu.memory_space<vmem>>, %arg8: memref<128x128xf32, #tpu.memory_space<vmem>>, %arg9: memref<1x128xf32, #tpu.memory_space<vmem>>, %arg10: memref<128x128xf32, #tpu.memory_space<vmem>>, %arg11: memref<1x128xf32, #tpu.memory_space<vmem>>, %arg12: memref<128x128xf32, #tpu.memory_space<vmem>>, %arg13: memref<1x128xf32, #tpu.memory_space<vmem>>, %arg14: memref<128x128xf32, #tpu.memory_space<vmem>>, %arg15: memref<1x128xf32, #tpu.memory_space<vmem>>, %arg16: memref<8x128xf32, #tpu.memory_space<vmem>>, %arg17: memref<16x128xf32, #tpu.memory_space<vmem>>, %arg18: memref<1x128xf32, #tpu.memory_space<vmem>>, %arg19: memref<16x128xf32, #tpu.memory_space<vmem>>, %arg20: memref<16x128xf32, #tpu.memory_space<vmem>>, %arg21: memref<8x128xf32, #tpu.memory_space<vmem>>) attributes {dimension_semantics = [], scalar_prefetch = 0 : i64, scratch_operands = 3 : i64, tpu.core_type = #tpu.core_type<tc>} {
    %c0 = arith.constant 0 : index
    %c0_0 = arith.constant 0 : index
    %0 = vector.load %arg2[%c0, %c0_0] : memref<8x128xf32, #tpu.memory_space<vmem>>, vector<8x128xf32>
    %c0_1 = arith.constant 0 : index
    %c0_2 = arith.constant 0 : index
    %1 = vector.load %arg3[%c0_1, %c0_2] : memref<128x128xf32, #tpu.memory_space<vmem>>, vector<128x128xf32>
    %cst = arith.constant dense<0.000000e+00> : vector<8x128xf32>
    %2 = tpu.matmul %0, %1, %cst {dimension_numbers = #tpu.dot_dimension_numbers<[1], [0], [0], [1], [0, 0, 1, 1], [], []>} : vector<8x128xf32>, vector<128x128xf32>, vector<8x128xf32> -> vector<8x128xf32>
    %c0_3 = arith.constant 0 : index
    %c0_4 = arith.constant 0 : index
    %3 = vector.load %arg4[%c0_3, %c0_4] : memref<1x128xf32, #tpu.memory_space<vmem>>, vector<1x128xf32>
    %4 = vector.broadcast %3 : vector<1x128xf32> to vector<8x128xf32>
    %5 = arith.addf %2, %4 : vector<8x128xf32>
    %cst_5 = arith.constant 0.000000e+00 : f32
    %6 = vector.broadcast %cst_5 : f32 to vector<8x128xf32>
    %7 = arith.maximumf %5, %6 : vector<8x128xf32>
    %c0_6 = arith.constant 0 : index
    %c0_7 = arith.constant 0 : index
    %8 = vector.load %arg16[%c0_6, %c0_7] : memref<8x128xf32, #tpu.memory_space<vmem>>, vector<8x128xf32>
    tpu.vector_store %arg16[%c0_6, %c0_7], %7 {strides = array<i32>} : memref<8x128xf32, #tpu.memory_space<vmem>>, vector<8x128xf32>,
    %cst_8 = arith.constant 0.000000e+00 : f32
    %9 = vector.broadcast %cst_8 : f32 to vector<16x128xf32>
    %c0_9 = arith.constant 0 : index
    %c0_10 = arith.constant 0 : index
    %10 = vector.load %arg19[%c0_9, %c0_10] : memref<16x128xf32, #tpu.memory_space<vmem>>, vector<16x128xf32>
    tpu.vector_store %arg19[%c0_9, %c0_10], %9 {strides = array<i32>} : memref<16x128xf32, #tpu.memory_space<vmem>>, vector<16x128xf32>,
    %cst_11 = arith.constant 0.000000e+00 : f32
    %11 = vector.broadcast %cst_11 : f32 to vector<16x128xf32>
    %c0_12 = arith.constant 0 : index
    %c0_13 = arith.constant 0 : index
    %12 = vector.load %arg20[%c0_12, %c0_13] : memref<16x128xf32, #tpu.memory_space<vmem>>, vector<16x128xf32>
    tpu.vector_store %arg20[%c0_12, %c0_13], %11 {strides = array<i32>} : memref<16x128xf32, #tpu.memory_space<vmem>>, vector<16x128xf32>,
    %c0_14 = arith.constant 0 : index
    %c0_15 = arith.constant 0 : index
    %13 = vector.load %arg9[%c0_14, %c0_15] : memref<1x128xf32, #tpu.memory_space<vmem>>, vector<1x128xf32>
    %c0_16 = arith.constant 0 : index
    %c0_17 = arith.constant 0 : index
    %14 = vector.load %arg11[%c0_16, %c0_17] : memref<1x128xf32, #tpu.memory_space<vmem>>, vector<1x128xf32>
    %c0_i32 = arith.constant 0 : i32
    %c12_i32 = arith.constant 12 : i32
    %15 = arith.addi %c0_i32, %c12_i32 : i32
    %c1_i32 = arith.constant 1 : i32
    scf.for %arg22 = %c0_i32 to %15 step %c1_i32  : i32 {
      %171 = arith.index_cast %arg22 : i32 to index
      %172 = memref.load %arg0[%171] : memref<12xi32, #tpu.memory_space<smem>>
      %173 = arith.index_cast %arg22 : i32 to index
      %174 = memref.load %arg1[%173] : memref<12xi32, #tpu.memory_space<smem>>
      %175 = arith.index_cast %172 : i32 to index
      %c0_175 = arith.constant 0 : index
      %176 = vector.load %arg16[%175, %c0_175] : memref<8x128xf32, #tpu.memory_space<vmem>>, vector<1x128xf32>
      %177 = arith.index_cast %arg22 : i32 to index
      %c0_176 = arith.constant 0 : index
      %178 = vector.load %arg19[%177, %c0_176] : memref<16x128xf32, #tpu.memory_space<vmem>>, vector<1x128xf32>
      tpu.vector_store %arg19[%177, %c0_176], %176 {strides = array<i32>} : memref<16x128xf32, #tpu.memory_space<vmem>>, vector<1x128xf32>,
      %179 = arith.index_cast %174 : i32 to index
      %c0_177 = arith.constant 0 : index
      %180 = vector.load %arg16[%179, %c0_177] : memref<8x128xf32, #tpu.memory_space<vmem>>, vector<1x128xf32>
      %181 = arith.index_cast %arg22 : i32 to index
      %c0_178 = arith.constant 0 : index
      %182 = vector.load %arg20[%181, %c0_178] : memref<16x128xf32, #tpu.memory_space<vmem>>, vector<1x128xf32>
      tpu.vector_store %arg20[%181, %c0_178], %180 {strides = array<i32>} : memref<16x128xf32, #tpu.memory_space<vmem>>, vector<1x128xf32>,
    }
    %c12_i32_18 = arith.constant 12 : i32
    %c0_19 = arith.constant 0 : index
    %c0_20 = arith.constant 0 : index
    %16 = vector.load %arg19[%c0_19, %c0_20] : memref<16x128xf32, #tpu.memory_space<vmem>>, vector<16x128xf32>
    %c0_21 = arith.constant 0 : index
    %c0_22 = arith.constant 0 : index
    %17 = vector.load %arg7[%c0_21, %c0_22] : memref<128x128xf32, #tpu.memory_space<vmem>>, vector<128x128xf32>
    %cst_23 = arith.constant dense<0.000000e+00> : vector<16x128xf32>
    %18 = tpu.matmul %16, %17, %cst_23 {dimension_numbers = #tpu.dot_dimension_numbers<[1], [0], [0], [1], [0, 0, 1, 1], [], []>} : vector<16x128xf32>, vector<128x128xf32>, vector<16x128xf32> -> vector<16x128xf32>
    %c0_24 = arith.constant 0 : index
    %c0_25 = arith.constant 0 : index
    %19 = vector.load %arg20[%c0_24, %c0_25] : memref<16x128xf32, #tpu.memory_space<vmem>>, vector<16x128xf32>
    %c0_26 = arith.constant 0 : index
    %c0_27 = arith.constant 0 : index
    %20 = vector.load %arg8[%c0_26, %c0_27] : memref<128x128xf32, #tpu.memory_space<vmem>>, vector<128x128xf32>
    %cst_28 = arith.constant dense<0.000000e+00> : vector<16x128xf32>
    %21 = tpu.matmul %19, %20, %cst_28 {dimension_numbers = #tpu.dot_dimension_numbers<[1], [0], [0], [1], [0, 0, 1, 1], [], []>} : vector<16x128xf32>, vector<128x128xf32>, vector<16x128xf32> -> vector<16x128xf32>
    %22 = arith.addf %18, %21 : vector<16x128xf32>
    %23 = vector.broadcast %13 : vector<1x128xf32> to vector<16x128xf32>
    %24 = arith.addf %22, %23 : vector<16x128xf32>
    %cst_29 = arith.constant 0.000000e+00 : f32
    %25 = vector.broadcast %cst_29 : f32 to vector<16x128xf32>
    %26 = arith.maximumf %24, %25 : vector<16x128xf32>
    %c0_30 = arith.constant 0 : index
    %c0_31 = arith.constant 0 : index
    %27 = vector.load %arg10[%c0_30, %c0_31] : memref<128x128xf32, #tpu.memory_space<vmem>>, vector<128x128xf32>
    %cst_32 = arith.constant dense<0.000000e+00> : vector<16x128xf32>
    %28 = tpu.matmul %26, %27, %cst_32 {dimension_numbers = #tpu.dot_dimension_numbers<[1], [0], [0], [1], [0, 0, 1, 1], [], []>} : vector<16x128xf32>, vector<128x128xf32>, vector<16x128xf32> -> vector<16x128xf32>
    %29 = vector.broadcast %14 : vector<1x128xf32> to vector<16x128xf32>
    %30 = arith.addf %28, %29 : vector<16x128xf32>
    %31 = arith.negf %30 : vector<16x128xf32>
    %32 = math.exp %31 : vector<16x128xf32>
    %cst_33 = arith.constant 1.000000e+00 : f32
    %33 = vector.broadcast %cst_33 : f32 to vector<16x128xf32>
    %34 = arith.addf %33, %32 : vector<16x128xf32>
    %35 = arith.divf %33, %34 : vector<16x128xf32>
    %cst_34 = arith.constant 5.000000e-01 : f32
    %36 = vector.broadcast %cst_34 : f32 to vector<16x128xf32>
    %37 = arith.subf %35, %36 : vector<16x128xf32>
    %38 = arith.negf %37 : vector<16x128xf32>
    %39 = math.exp %38 : vector<16x128xf32>
    %cst_35 = arith.constant 1.000000e+00 : f32
    %40 = vector.broadcast %cst_35 : f32 to vector<16x128xf32>
    %41 = arith.addf %40, %39 : vector<16x128xf32>
    %42 = arith.divf %40, %41 : vector<16x128xf32>
    %c0_36 = arith.constant 0 : index
    %c0_37 = arith.constant 0 : index
    %43 = vector.load %arg17[%c0_36, %c0_37] : memref<16x128xf32, #tpu.memory_space<vmem>>, vector<16x128xf32>
    tpu.vector_store %arg17[%c0_36, %c0_37], %42 {strides = array<i32>} : memref<16x128xf32, #tpu.memory_space<vmem>>, vector<16x128xf32>,
    %c0_38 = arith.constant 0 : index
    %c0_39 = arith.constant 0 : index
    %44 = vector.load %arg19[%c0_38, %c0_39] : memref<16x128xf32, #tpu.memory_space<vmem>>, vector<16x128xf32>
    %c0_40 = arith.constant 0 : index
    %c0_41 = arith.constant 0 : index
    %45 = vector.load %arg17[%c0_40, %c0_41] : memref<16x128xf32, #tpu.memory_space<vmem>>, vector<16x128xf32>
    %46 = arith.mulf %44, %45 : vector<16x128xf32>
    %c0_42 = arith.constant 0 : index
    %c0_43 = arith.constant 0 : index
    %47 = vector.load %arg19[%c0_42, %c0_43] : memref<16x128xf32, #tpu.memory_space<vmem>>, vector<16x128xf32>
    tpu.vector_store %arg19[%c0_42, %c0_43], %46 {strides = array<i32>} : memref<16x128xf32, #tpu.memory_space<vmem>>, vector<16x128xf32>,
    %cst_44 = arith.constant 0.000000e+00 : f32
    %48 = vector.broadcast %cst_44 : f32 to vector<8x128xf32>
    %c0_45 = arith.constant 0 : index
    %c0_46 = arith.constant 0 : index
    %49 = vector.load %arg21[%c0_45, %c0_46] : memref<8x128xf32, #tpu.memory_space<vmem>>, vector<8x128xf32>
    tpu.vector_store %arg21[%c0_45, %c0_46], %48 {strides = array<i32>} : memref<8x128xf32, #tpu.memory_space<vmem>>, vector<8x128xf32>,
    %c0_i32_47 = arith.constant 0 : i32
    %c12_i32_48 = arith.constant 12 : i32
    %50 = arith.addi %c0_i32_47, %c12_i32_48 : i32
    %c1_i32_49 = arith.constant 1 : i32
    scf.for %arg22 = %c0_i32_47 to %50 step %c1_i32_49  : i32 {
      %171 = arith.index_cast %arg22 : i32 to index
      %172 = memref.load %arg1[%171] : memref<12xi32, #tpu.memory_space<smem>>
      %173 = arith.index_cast %172 : i32 to index
      %c0_175 = arith.constant 0 : index
      %174 = vector.load %arg21[%173, %c0_175] : memref<8x128xf32, #tpu.memory_space<vmem>>, vector<1x128xf32>
      %175 = arith.index_cast %arg22 : i32 to index
      %c0_176 = arith.constant 0 : index
      %176 = vector.load %arg19[%175, %c0_176] : memref<16x128xf32, #tpu.memory_space<vmem>>, vector<1x128xf32>
      %177 = arith.addf %174, %176 : vector<1x128xf32>
      %178 = arith.index_cast %172 : i32 to index
      %c0_177 = arith.constant 0 : index
      %179 = vector.load %arg21[%178, %c0_177] : memref<8x128xf32, #tpu.memory_space<vmem>>, vector<1x128xf32>
      tpu.vector_store %arg21[%178, %c0_177], %177 {strides = array<i32>} : memref<8x128xf32, #tpu.memory_space<vmem>>, vector<1x128xf32>,
    }
    %c12_i32_50 = arith.constant 12 : i32
    %c0_51 = arith.constant 0 : index
    %c0_52 = arith.constant 0 : index
    %51 = vector.load %arg16[%c0_51, %c0_52] : memref<8x128xf32, #tpu.memory_space<vmem>>, vector<8x128xf32>
    %c0_53 = arith.constant 0 : index
    %c0_54 = arith.constant 0 : index
    %52 = vector.load %arg21[%c0_53, %c0_54] : memref<8x128xf32, #tpu.memory_space<vmem>>, vector<8x128xf32>
    %53 = arith.addf %51, %52 : vector<8x128xf32>
    %c0_55 = arith.constant 0 : index
    %c0_56 = arith.constant 0 : index
    %c0_57 = arith.constant 0 : index
    %54 = vector.load %arg5[%c0_55, %c0_56, %c0_57] : memref<3x128x128xf32, #tpu.memory_space<vmem>>, vector<1x128x128xf32>
    %55 = vector.shape_cast %54 : vector<1x128x128xf32> to vector<128x128xf32>
    %cst_58 = arith.constant dense<0.000000e+00> : vector<8x128xf32>
    %56 = tpu.matmul %53, %55, %cst_58 {dimension_numbers = #tpu.dot_dimension_numbers<[1], [0], [0], [1], [0, 0, 1, 1], [], []>} : vector<8x128xf32>, vector<128x128xf32>, vector<8x128xf32> -> vector<8x128xf32>
    %c0_59 = arith.constant 0 : index
    %c0_60 = arith.constant 0 : index
    %57 = vector.load %arg6[%c0_59, %c0_60] : memref<3x128xf32, #tpu.memory_space<vmem>>, vector<1x128xf32>
    %58 = vector.broadcast %57 : vector<1x128xf32> to vector<8x128xf32>
    %59 = arith.addf %56, %58 : vector<8x128xf32>
    %cst_61 = arith.constant 0.000000e+00 : f32
    %60 = vector.broadcast %cst_61 : f32 to vector<8x128xf32>
    %61 = arith.maximumf %59, %60 : vector<8x128xf32>
    %c0_62 = arith.constant 0 : index
    %c0_63 = arith.constant 0 : index
    %62 = vector.load %arg16[%c0_62, %c0_63] : memref<8x128xf32, #tpu.memory_space<vmem>>, vector<8x128xf32>
    tpu.vector_store %arg16[%c0_62, %c0_63], %61 {strides = array<i32>} : memref<8x128xf32, #tpu.memory_space<vmem>>, vector<8x128xf32>,
    %c0_i32_64 = arith.constant 0 : i32
    %c12_i32_65 = arith.constant 12 : i32
    %63 = arith.addi %c0_i32_64, %c12_i32_65 : i32
    %c1_i32_66 = arith.constant 1 : i32
    scf.for %arg22 = %c0_i32_64 to %63 step %c1_i32_66  : i32 {
      %171 = arith.index_cast %arg22 : i32 to index
      %172 = memref.load %arg0[%171] : memref<12xi32, #tpu.memory_space<smem>>
      %173 = arith.index_cast %arg22 : i32 to index
      %174 = memref.load %arg1[%173] : memref<12xi32, #tpu.memory_space<smem>>
      %175 = arith.index_cast %172 : i32 to index
      %c0_175 = arith.constant 0 : index
      %176 = vector.load %arg16[%175, %c0_175] : memref<8x128xf32, #tpu.memory_space<vmem>>, vector<1x128xf32>
      %177 = arith.index_cast %arg22 : i32 to index
      %c0_176 = arith.constant 0 : index
      %178 = vector.load %arg19[%177, %c0_176] : memref<16x128xf32, #tpu.memory_space<vmem>>, vector<1x128xf32>
      tpu.vector_store %arg19[%177, %c0_176], %176 {strides = array<i32>} : memref<16x128xf32, #tpu.memory_space<vmem>>, vector<1x128xf32>,
      %179 = arith.index_cast %174 : i32 to index
      %c0_177 = arith.constant 0 : index
      %180 = vector.load %arg16[%179, %c0_177] : memref<8x128xf32, #tpu.memory_space<vmem>>, vector<1x128xf32>
      %181 = arith.index_cast %arg22 : i32 to index
      %c0_178 = arith.constant 0 : index
      %182 = vector.load %arg20[%181, %c0_178] : memref<16x128xf32, #tpu.memory_space<vmem>>, vector<1x128xf32>
      tpu.vector_store %arg20[%181, %c0_178], %180 {strides = array<i32>} : memref<16x128xf32, #tpu.memory_space<vmem>>, vector<1x128xf32>,
    }
    %c12_i32_67 = arith.constant 12 : i32
    %c0_68 = arith.constant 0 : index
    %c0_69 = arith.constant 0 : index
    %64 = vector.load %arg19[%c0_68, %c0_69] : memref<16x128xf32, #tpu.memory_space<vmem>>, vector<16x128xf32>
    %c0_70 = arith.constant 0 : index
    %c0_71 = arith.constant 0 : index
    %65 = vector.load %arg7[%c0_70, %c0_71] : memref<128x128xf32, #tpu.memory_space<vmem>>, vector<128x128xf32>
    %cst_72 = arith.constant dense<0.000000e+00> : vector<16x128xf32>
    %66 = tpu.matmul %64, %65, %cst_72 {dimension_numbers = #tpu.dot_dimension_numbers<[1], [0], [0], [1], [0, 0, 1, 1], [], []>} : vector<16x128xf32>, vector<128x128xf32>, vector<16x128xf32> -> vector<16x128xf32>
    %c0_73 = arith.constant 0 : index
    %c0_74 = arith.constant 0 : index
    %67 = vector.load %arg20[%c0_73, %c0_74] : memref<16x128xf32, #tpu.memory_space<vmem>>, vector<16x128xf32>
    %c0_75 = arith.constant 0 : index
    %c0_76 = arith.constant 0 : index
    %68 = vector.load %arg8[%c0_75, %c0_76] : memref<128x128xf32, #tpu.memory_space<vmem>>, vector<128x128xf32>
    %cst_77 = arith.constant dense<0.000000e+00> : vector<16x128xf32>
    %69 = tpu.matmul %67, %68, %cst_77 {dimension_numbers = #tpu.dot_dimension_numbers<[1], [0], [0], [1], [0, 0, 1, 1], [], []>} : vector<16x128xf32>, vector<128x128xf32>, vector<16x128xf32> -> vector<16x128xf32>
    %70 = arith.addf %66, %69 : vector<16x128xf32>
    %71 = vector.broadcast %13 : vector<1x128xf32> to vector<16x128xf32>
    %72 = arith.addf %70, %71 : vector<16x128xf32>
    %cst_78 = arith.constant 0.000000e+00 : f32
    %73 = vector.broadcast %cst_78 : f32 to vector<16x128xf32>
    %74 = arith.maximumf %72, %73 : vector<16x128xf32>
    %c0_79 = arith.constant 0 : index
    %c0_80 = arith.constant 0 : index
    %75 = vector.load %arg10[%c0_79, %c0_80] : memref<128x128xf32, #tpu.memory_space<vmem>>, vector<128x128xf32>
    %cst_81 = arith.constant dense<0.000000e+00> : vector<16x128xf32>
    %76 = tpu.matmul %74, %75, %cst_81 {dimension_numbers = #tpu.dot_dimension_numbers<[1], [0], [0], [1], [0, 0, 1, 1], [], []>} : vector<16x128xf32>, vector<128x128xf32>, vector<16x128xf32> -> vector<16x128xf32>
    %77 = vector.broadcast %14 : vector<1x128xf32> to vector<16x128xf32>
    %78 = arith.addf %76, %77 : vector<16x128xf32>
    %79 = arith.negf %78 : vector<16x128xf32>
    %80 = math.exp %79 : vector<16x128xf32>
    %cst_82 = arith.constant 1.000000e+00 : f32
    %81 = vector.broadcast %cst_82 : f32 to vector<16x128xf32>
    %82 = arith.addf %81, %80 : vector<16x128xf32>
    %83 = arith.divf %81, %82 : vector<16x128xf32>
    %cst_83 = arith.constant 5.000000e-01 : f32
    %84 = vector.broadcast %cst_83 : f32 to vector<16x128xf32>
    %85 = arith.subf %83, %84 : vector<16x128xf32>
    %86 = arith.negf %85 : vector<16x128xf32>
    %87 = math.exp %86 : vector<16x128xf32>
    %cst_84 = arith.constant 1.000000e+00 : f32
    %88 = vector.broadcast %cst_84 : f32 to vector<16x128xf32>
    %89 = arith.addf %88, %87 : vector<16x128xf32>
    %90 = arith.divf %88, %89 : vector<16x128xf32>
    %c0_85 = arith.constant 0 : index
    %c0_86 = arith.constant 0 : index
    %91 = vector.load %arg17[%c0_85, %c0_86] : memref<16x128xf32, #tpu.memory_space<vmem>>, vector<16x128xf32>
    tpu.vector_store %arg17[%c0_85, %c0_86], %90 {strides = array<i32>} : memref<16x128xf32, #tpu.memory_space<vmem>>, vector<16x128xf32>,
    %c0_87 = arith.constant 0 : index
    %c0_88 = arith.constant 0 : index
    %92 = vector.load %arg19[%c0_87, %c0_88] : memref<16x128xf32, #tpu.memory_space<vmem>>, vector<16x128xf32>
    %c0_89 = arith.constant 0 : index
    %c0_90 = arith.constant 0 : index
    %93 = vector.load %arg17[%c0_89, %c0_90] : memref<16x128xf32, #tpu.memory_space<vmem>>, vector<16x128xf32>
    %94 = arith.mulf %92, %93 : vector<16x128xf32>
    %c0_91 = arith.constant 0 : index
    %c0_92 = arith.constant 0 : index
    %95 = vector.load %arg19[%c0_91, %c0_92] : memref<16x128xf32, #tpu.memory_space<vmem>>, vector<16x128xf32>
    tpu.vector_store %arg19[%c0_91, %c0_92], %94 {strides = array<i32>} : memref<16x128xf32, #tpu.memory_space<vmem>>, vector<16x128xf32>,
    %cst_93 = arith.constant 0.000000e+00 : f32
    %96 = vector.broadcast %cst_93 : f32 to vector<8x128xf32>
    %c0_94 = arith.constant 0 : index
    %c0_95 = arith.constant 0 : index
    %97 = vector.load %arg21[%c0_94, %c0_95] : memref<8x128xf32, #tpu.memory_space<vmem>>, vector<8x128xf32>
    tpu.vector_store %arg21[%c0_94, %c0_95], %96 {strides = array<i32>} : memref<8x128xf32, #tpu.memory_space<vmem>>, vector<8x128xf32>,
    %c0_i32_96 = arith.constant 0 : i32
    %c12_i32_97 = arith.constant 12 : i32
    %98 = arith.addi %c0_i32_96, %c12_i32_97 : i32
    %c1_i32_98 = arith.constant 1 : i32
    scf.for %arg22 = %c0_i32_96 to %98 step %c1_i32_98  : i32 {
      %171 = arith.index_cast %arg22 : i32 to index
      %172 = memref.load %arg1[%171] : memref<12xi32, #tpu.memory_space<smem>>
      %173 = arith.index_cast %172 : i32 to index
      %c0_175 = arith.constant 0 : index
      %174 = vector.load %arg21[%173, %c0_175] : memref<8x128xf32, #tpu.memory_space<vmem>>, vector<1x128xf32>
      %175 = arith.index_cast %arg22 : i32 to index
      %c0_176 = arith.constant 0 : index
      %176 = vector.load %arg19[%175, %c0_176] : memref<16x128xf32, #tpu.memory_space<vmem>>, vector<1x128xf32>
      %177 = arith.addf %174, %176 : vector<1x128xf32>
      %178 = arith.index_cast %172 : i32 to index
      %c0_177 = arith.constant 0 : index
      %179 = vector.load %arg21[%178, %c0_177] : memref<8x128xf32, #tpu.memory_space<vmem>>, vector<1x128xf32>
      tpu.vector_store %arg21[%178, %c0_177], %177 {strides = array<i32>} : memref<8x128xf32, #tpu.memory_space<vmem>>, vector<1x128xf32>,
    }
    %c12_i32_99 = arith.constant 12 : i32
    %c0_100 = arith.constant 0 : index
    %c0_101 = arith.constant 0 : index
    %99 = vector.load %arg16[%c0_100, %c0_101] : memref<8x128xf32, #tpu.memory_space<vmem>>, vector<8x128xf32>
    %c0_102 = arith.constant 0 : index
    %c0_103 = arith.constant 0 : index
    %100 = vector.load %arg21[%c0_102, %c0_103] : memref<8x128xf32, #tpu.memory_space<vmem>>, vector<8x128xf32>
    %101 = arith.addf %99, %100 : vector<8x128xf32>
    %c1 = arith.constant 1 : index
    %c0_104 = arith.constant 0 : index
    %c0_105 = arith.constant 0 : index
    %102 = vector.load %arg5[%c1, %c0_104, %c0_105] : memref<3x128x128xf32, #tpu.memory_space<vmem>>, vector<1x128x128xf32>
    %103 = vector.shape_cast %102 : vector<1x128x128xf32> to vector<128x128xf32>
    %cst_106 = arith.constant dense<0.000000e+00> : vector<8x128xf32>
    %104 = tpu.matmul %101, %103, %cst_106 {dimension_numbers = #tpu.dot_dimension_numbers<[1], [0], [0], [1], [0, 0, 1, 1], [], []>} : vector<8x128xf32>, vector<128x128xf32>, vector<8x128xf32> -> vector<8x128xf32>
    %c1_107 = arith.constant 1 : index
    %c0_108 = arith.constant 0 : index
    %105 = vector.load %arg6[%c1_107, %c0_108] : memref<3x128xf32, #tpu.memory_space<vmem>>, vector<1x128xf32>
    %106 = vector.broadcast %105 : vector<1x128xf32> to vector<8x128xf32>
    %107 = arith.addf %104, %106 : vector<8x128xf32>
    %cst_109 = arith.constant 0.000000e+00 : f32
    %108 = vector.broadcast %cst_109 : f32 to vector<8x128xf32>
    %109 = arith.maximumf %107, %108 : vector<8x128xf32>
    %c0_110 = arith.constant 0 : index
    %c0_111 = arith.constant 0 : index
    %110 = vector.load %arg16[%c0_110, %c0_111] : memref<8x128xf32, #tpu.memory_space<vmem>>, vector<8x128xf32>
    tpu.vector_store %arg16[%c0_110, %c0_111], %109 {strides = array<i32>} : memref<8x128xf32, #tpu.memory_space<vmem>>, vector<8x128xf32>,
    %c0_i32_112 = arith.constant 0 : i32
    %c12_i32_113 = arith.constant 12 : i32
    %111 = arith.addi %c0_i32_112, %c12_i32_113 : i32
    %c1_i32_114 = arith.constant 1 : i32
    scf.for %arg22 = %c0_i32_112 to %111 step %c1_i32_114  : i32 {
      %171 = arith.index_cast %arg22 : i32 to index
      %172 = memref.load %arg0[%171] : memref<12xi32, #tpu.memory_space<smem>>
      %173 = arith.index_cast %arg22 : i32 to index
      %174 = memref.load %arg1[%173] : memref<12xi32, #tpu.memory_space<smem>>
      %175 = arith.index_cast %172 : i32 to index
      %c0_175 = arith.constant 0 : index
      %176 = vector.load %arg16[%175, %c0_175] : memref<8x128xf32, #tpu.memory_space<vmem>>, vector<1x128xf32>
      %177 = arith.index_cast %arg22 : i32 to index
      %c0_176 = arith.constant 0 : index
      %178 = vector.load %arg19[%177, %c0_176] : memref<16x128xf32, #tpu.memory_space<vmem>>, vector<1x128xf32>
      tpu.vector_store %arg19[%177, %c0_176], %176 {strides = array<i32>} : memref<16x128xf32, #tpu.memory_space<vmem>>, vector<1x128xf32>,
      %179 = arith.index_cast %174 : i32 to index
      %c0_177 = arith.constant 0 : index
      %180 = vector.load %arg16[%179, %c0_177] : memref<8x128xf32, #tpu.memory_space<vmem>>, vector<1x128xf32>
      %181 = arith.index_cast %arg22 : i32 to index
      %c0_178 = arith.constant 0 : index
      %182 = vector.load %arg20[%181, %c0_178] : memref<16x128xf32, #tpu.memory_space<vmem>>, vector<1x128xf32>
      tpu.vector_store %arg20[%181, %c0_178], %180 {strides = array<i32>} : memref<16x128xf32, #tpu.memory_space<vmem>>, vector<1x128xf32>,
    }
    %c12_i32_115 = arith.constant 12 : i32
    %c0_116 = arith.constant 0 : index
    %c0_117 = arith.constant 0 : index
    %112 = vector.load %arg19[%c0_116, %c0_117] : memref<16x128xf32, #tpu.memory_space<vmem>>, vector<16x128xf32>
    %c0_118 = arith.constant 0 : index
    %c0_119 = arith.constant 0 : index
    %113 = vector.load %arg7[%c0_118, %c0_119] : memref<128x128xf32, #tpu.memory_space<vmem>>, vector<128x128xf32>
    %cst_120 = arith.constant dense<0.000000e+00> : vector<16x128xf32>
    %114 = tpu.matmul %112, %113, %cst_120 {dimension_numbers = #tpu.dot_dimension_numbers<[1], [0], [0], [1], [0, 0, 1, 1], [], []>} : vector<16x128xf32>, vector<128x128xf32>, vector<16x128xf32> -> vector<16x128xf32>
    %c0_121 = arith.constant 0 : index
    %c0_122 = arith.constant 0 : index
    %115 = vector.load %arg20[%c0_121, %c0_122] : memref<16x128xf32, #tpu.memory_space<vmem>>, vector<16x128xf32>
    %c0_123 = arith.constant 0 : index
    %c0_124 = arith.constant 0 : index
    %116 = vector.load %arg8[%c0_123, %c0_124] : memref<128x128xf32, #tpu.memory_space<vmem>>, vector<128x128xf32>
    %cst_125 = arith.constant dense<0.000000e+00> : vector<16x128xf32>
    %117 = tpu.matmul %115, %116, %cst_125 {dimension_numbers = #tpu.dot_dimension_numbers<[1], [0], [0], [1], [0, 0, 1, 1], [], []>} : vector<16x128xf32>, vector<128x128xf32>, vector<16x128xf32> -> vector<16x128xf32>
    %118 = arith.addf %114, %117 : vector<16x128xf32>
    %119 = vector.broadcast %13 : vector<1x128xf32> to vector<16x128xf32>
    %120 = arith.addf %118, %119 : vector<16x128xf32>
    %cst_126 = arith.constant 0.000000e+00 : f32
    %121 = vector.broadcast %cst_126 : f32 to vector<16x128xf32>
    %122 = arith.maximumf %120, %121 : vector<16x128xf32>
    %c0_127 = arith.constant 0 : index
    %c0_128 = arith.constant 0 : index
    %123 = vector.load %arg10[%c0_127, %c0_128] : memref<128x128xf32, #tpu.memory_space<vmem>>, vector<128x128xf32>
    %cst_129 = arith.constant dense<0.000000e+00> : vector<16x128xf32>
    %124 = tpu.matmul %122, %123, %cst_129 {dimension_numbers = #tpu.dot_dimension_numbers<[1], [0], [0], [1], [0, 0, 1, 1], [], []>} : vector<16x128xf32>, vector<128x128xf32>, vector<16x128xf32> -> vector<16x128xf32>
    %125 = vector.broadcast %14 : vector<1x128xf32> to vector<16x128xf32>
    %126 = arith.addf %124, %125 : vector<16x128xf32>
    %127 = arith.negf %126 : vector<16x128xf32>
    %128 = math.exp %127 : vector<16x128xf32>
    %cst_130 = arith.constant 1.000000e+00 : f32
    %129 = vector.broadcast %cst_130 : f32 to vector<16x128xf32>
    %130 = arith.addf %129, %128 : vector<16x128xf32>
    %131 = arith.divf %129, %130 : vector<16x128xf32>
    %cst_131 = arith.constant 5.000000e-01 : f32
    %132 = vector.broadcast %cst_131 : f32 to vector<16x128xf32>
    %133 = arith.subf %131, %132 : vector<16x128xf32>
    %134 = arith.negf %133 : vector<16x128xf32>
    %135 = math.exp %134 : vector<16x128xf32>
    %cst_132 = arith.constant 1.000000e+00 : f32
    %136 = vector.broadcast %cst_132 : f32 to vector<16x128xf32>
    %137 = arith.addf %136, %135 : vector<16x128xf32>
    %138 = arith.divf %136, %137 : vector<16x128xf32>
    %c0_133 = arith.constant 0 : index
    %c0_134 = arith.constant 0 : index
    %139 = vector.load %arg17[%c0_133, %c0_134] : memref<16x128xf32, #tpu.memory_space<vmem>>, vector<16x128xf32>
    tpu.vector_store %arg17[%c0_133, %c0_134], %138 {strides = array<i32>} : memref<16x128xf32, #tpu.memory_space<vmem>>, vector<16x128xf32>,
    %c0_135 = arith.constant 0 : index
    %c0_136 = arith.constant 0 : index
    %140 = vector.load %arg19[%c0_135, %c0_136] : memref<16x128xf32, #tpu.memory_space<vmem>>, vector<16x128xf32>
    %c0_137 = arith.constant 0 : index
    %c0_138 = arith.constant 0 : index
    %141 = vector.load %arg17[%c0_137, %c0_138] : memref<16x128xf32, #tpu.memory_space<vmem>>, vector<16x128xf32>
    %142 = arith.mulf %140, %141 : vector<16x128xf32>
    %c0_139 = arith.constant 0 : index
    %c0_140 = arith.constant 0 : index
    %143 = vector.load %arg19[%c0_139, %c0_140] : memref<16x128xf32, #tpu.memory_space<vmem>>, vector<16x128xf32>
    tpu.vector_store %arg19[%c0_139, %c0_140], %142 {strides = array<i32>} : memref<16x128xf32, #tpu.memory_space<vmem>>, vector<16x128xf32>,
    %cst_141 = arith.constant 0.000000e+00 : f32
    %144 = vector.broadcast %cst_141 : f32 to vector<8x128xf32>
    %c0_142 = arith.constant 0 : index
    %c0_143 = arith.constant 0 : index
    %145 = vector.load %arg21[%c0_142, %c0_143] : memref<8x128xf32, #tpu.memory_space<vmem>>, vector<8x128xf32>
    tpu.vector_store %arg21[%c0_142, %c0_143], %144 {strides = array<i32>} : memref<8x128xf32, #tpu.memory_space<vmem>>, vector<8x128xf32>,
    %c0_i32_144 = arith.constant 0 : i32
    %c12_i32_145 = arith.constant 12 : i32
    %146 = arith.addi %c0_i32_144, %c12_i32_145 : i32
    %c1_i32_146 = arith.constant 1 : i32
    scf.for %arg22 = %c0_i32_144 to %146 step %c1_i32_146  : i32 {
      %171 = arith.index_cast %arg22 : i32 to index
      %172 = memref.load %arg1[%171] : memref<12xi32, #tpu.memory_space<smem>>
      %173 = arith.index_cast %172 : i32 to index
      %c0_175 = arith.constant 0 : index
      %174 = vector.load %arg21[%173, %c0_175] : memref<8x128xf32, #tpu.memory_space<vmem>>, vector<1x128xf32>
      %175 = arith.index_cast %arg22 : i32 to index
      %c0_176 = arith.constant 0 : index
      %176 = vector.load %arg19[%175, %c0_176] : memref<16x128xf32, #tpu.memory_space<vmem>>, vector<1x128xf32>
      %177 = arith.addf %174, %176 : vector<1x128xf32>
      %178 = arith.index_cast %172 : i32 to index
      %c0_177 = arith.constant 0 : index
      %179 = vector.load %arg21[%178, %c0_177] : memref<8x128xf32, #tpu.memory_space<vmem>>, vector<1x128xf32>
      tpu.vector_store %arg21[%178, %c0_177], %177 {strides = array<i32>} : memref<8x128xf32, #tpu.memory_space<vmem>>, vector<1x128xf32>,
    }
    %c12_i32_147 = arith.constant 12 : i32
    %c0_148 = arith.constant 0 : index
    %c0_149 = arith.constant 0 : index
    %147 = vector.load %arg16[%c0_148, %c0_149] : memref<8x128xf32, #tpu.memory_space<vmem>>, vector<8x128xf32>
    %c0_150 = arith.constant 0 : index
    %c0_151 = arith.constant 0 : index
    %148 = vector.load %arg21[%c0_150, %c0_151] : memref<8x128xf32, #tpu.memory_space<vmem>>, vector<8x128xf32>
    %149 = arith.addf %147, %148 : vector<8x128xf32>
    %c2 = arith.constant 2 : index
    %c0_152 = arith.constant 0 : index
    %c0_153 = arith.constant 0 : index
    %150 = vector.load %arg5[%c2, %c0_152, %c0_153] : memref<3x128x128xf32, #tpu.memory_space<vmem>>, vector<1x128x128xf32>
    %151 = vector.shape_cast %150 : vector<1x128x128xf32> to vector<128x128xf32>
    %cst_154 = arith.constant dense<0.000000e+00> : vector<8x128xf32>
    %152 = tpu.matmul %149, %151, %cst_154 {dimension_numbers = #tpu.dot_dimension_numbers<[1], [0], [0], [1], [0, 0, 1, 1], [], []>} : vector<8x128xf32>, vector<128x128xf32>, vector<8x128xf32> -> vector<8x128xf32>
    %c2_155 = arith.constant 2 : index
    %c0_156 = arith.constant 0 : index
    %153 = vector.load %arg6[%c2_155, %c0_156] : memref<3x128xf32, #tpu.memory_space<vmem>>, vector<1x128xf32>
    %154 = vector.broadcast %153 : vector<1x128xf32> to vector<8x128xf32>
    %155 = arith.addf %152, %154 : vector<8x128xf32>
    %cst_157 = arith.constant 0.000000e+00 : f32
    %156 = vector.broadcast %cst_157 : f32 to vector<8x128xf32>
    %157 = arith.maximumf %155, %156 : vector<8x128xf32>
    %c0_158 = arith.constant 0 : index
    %c0_159 = arith.constant 0 : index
    %158 = vector.load %arg16[%c0_158, %c0_159] : memref<8x128xf32, #tpu.memory_space<vmem>>, vector<8x128xf32>
    tpu.vector_store %arg16[%c0_158, %c0_159], %157 {strides = array<i32>} : memref<8x128xf32, #tpu.memory_space<vmem>>, vector<8x128xf32>,
    %c0_160 = arith.constant 0 : index
    %c0_161 = arith.constant 0 : index
    %159 = vector.load %arg16[%c0_160, %c0_161] : memref<8x128xf32, #tpu.memory_space<vmem>>, vector<1x128xf32>
    %c0_162 = arith.constant 0 : index
    %c0_163 = arith.constant 0 : index
    %160 = vector.load %arg12[%c0_162, %c0_163] : memref<128x128xf32, #tpu.memory_space<vmem>>, vector<128x128xf32>
    %cst_164 = arith.constant dense<0.000000e+00> : vector<1x128xf32>
    %161 = tpu.matmul %159, %160, %cst_164 {dimension_numbers = #tpu.dot_dimension_numbers<[1], [0], [0], [1], [0, 0, 1, 1], [], []>} : vector<1x128xf32>, vector<128x128xf32>, vector<1x128xf32> -> vector<1x128xf32>
    %c0_165 = arith.constant 0 : index
    %c0_166 = arith.constant 0 : index
    %162 = vector.load %arg13[%c0_165, %c0_166] : memref<1x128xf32, #tpu.memory_space<vmem>>, vector<1x128xf32>
    %163 = arith.addf %161, %162 : vector<1x128xf32>
    %cst_167 = arith.constant 0.000000e+00 : f32
    %164 = vector.broadcast %cst_167 : f32 to vector<1x128xf32>
    %165 = arith.maximumf %163, %164 : vector<1x128xf32>
    %c0_168 = arith.constant 0 : index
    %c0_169 = arith.constant 0 : index
    %166 = vector.load %arg14[%c0_168, %c0_169] : memref<128x128xf32, #tpu.memory_space<vmem>>, vector<128x128xf32>
    %cst_170 = arith.constant dense<0.000000e+00> : vector<1x128xf32>
    %167 = tpu.matmul %165, %166, %cst_170 {dimension_numbers = #tpu.dot_dimension_numbers<[1], [0], [0], [1], [0, 0, 1, 1], [], []>} : vector<1x128xf32>, vector<128x128xf32>, vector<1x128xf32> -> vector<1x128xf32>
    %c0_171 = arith.constant 0 : index
    %c0_172 = arith.constant 0 : index
    %168 = vector.load %arg15[%c0_171, %c0_172] : memref<1x128xf32, #tpu.memory_space<vmem>>, vector<1x128xf32>
    %169 = arith.addf %167, %168 : vector<1x128xf32>
    %c0_173 = arith.constant 0 : index
    %c0_174 = arith.constant 0 : index
    %170 = vector.load %arg18[%c0_173, %c0_174] : memref<1x128xf32, #tpu.memory_space<vmem>>, vector<1x128xf32>
    tpu.vector_store %arg18[%c0_173, %c0_174], %169 {strides = array<i32>} : memref<1x128xf32, #tpu.memory_space<vmem>>, vector<1x128xf32>,
    return
  }
}

</mosaic_0001>

<llo_original>
// kernel: gnn_softmask_forward.1
$region0: #{gnn_softmask_forward.1}
  #allocation0 [shape = 'u32[]', space=smem, size = 0x4, offset = 0x4, fixed_abs, tag = 'smem constant byte address 0x4 - core index']
  #allocation1 [shape = 'u32[144,128]{1,0:T(1,128)}', space=vmem, size = 0x12000, scoped, tag = 'internal scratch']
  #allocation2 [shape = 'f32[16,128]{1,0:T(8,128)}', space=vmem, size = 0x2000, scoped, tag = 'scratch operand']
  #allocation3 [shape = 'f32[16,128]{1,0:T(8,128)}', space=vmem, size = 0x2000, scoped, tag = 'scratch operand']
  #allocation4 [shape = 'f32[8,128]{1,0:T(8,128)}', space=vmem, size = 0x1000, scoped, tag = 'scratch operand']
  %s0 = inlined_call_operand.vmem [shape: s32[12], index: 0, kind: input, shape index: {}]
  %s1 = inlined_call_operand.vmem [shape: s32[12], index: 1, kind: input, shape index: {}]
  %s2 = inlined_call_operand.vmem [shape: f32[8,128], index: 2, kind: input, shape index: {}]
  %s3 = inlined_call_operand.hbm [shape: f32[128,128], index: 3, kind: input, shape index: {}]
  %s4 = inlined_call_operand.vmem [shape: f32[1,128], index: 4, kind: input, shape index: {}]
  %s5 = inlined_call_operand.hbm [shape: f32[3,128,128], index: 5, kind: input, shape index: {}]
  %s6 = inlined_call_operand.vmem [shape: f32[3,128], index: 6, kind: input, shape index: {}]
  %s7 = inlined_call_operand.hbm [shape: f32[128,128], index: 7, kind: input, shape index: {}]
  %s8 = inlined_call_operand.hbm [shape: f32[128,128], index: 8, kind: input, shape index: {}]
  %s9 = inlined_call_operand.vmem [shape: f32[1,128], index: 9, kind: input, shape index: {}]
  %s10 = inlined_call_operand.hbm [shape: f32[128,128], index: 10, kind: input, shape index: {}]
  %s11 = inlined_call_operand.vmem [shape: f32[1,128], index: 11, kind: input, shape index: {}]
  %s12 = inlined_call_operand.hbm [shape: f32[128,128], index: 12, kind: input, shape index: {}]
  %s13 = inlined_call_operand.vmem [shape: f32[1,128], index: 13, kind: input, shape index: {}]
  %s14 = inlined_call_operand.hbm [shape: f32[128,128], index: 14, kind: input, shape index: {}]
  %s15 = inlined_call_operand.vmem [shape: f32[1,128], index: 15, kind: input, shape index: {}]
  %s16 = inlined_call_operand.hbm [shape: f32[8,128], index: 16, kind: output, shape index: {0}]
  %s17 = inlined_call_operand.vmem [shape: f32[16,128], index: 17, kind: output, shape index: {1}]
  %s18 = inlined_call_operand.hbm [shape: f32[1,128], index: 18, kind: output, shape index: {2}]
  %19 = xla_tuple %s16, %s17, %s18
  %s20 = sld [smem:[#allocation0]]
  $region168: #{gnn_softmask_forward.1} parent=0
    _
  %s22 = ssub.s32 1, %s20
  %s23 = scalar_select 0, %s22, %s20
  $region1: #{gnn_softmask_forward.1} parent=0
    #allocation5 [shape = 'u8[512]{0}', space=smem, size = 0x200, scoped, tag = 'input window, operand 0, single buffered']
    #allocation6 [shape = 's32[1]{0}', space=sflag, size = 0x4, scoped, tag = 'scoped memory for gnn_softmask_forward.1']
    #allocation7 [shape = 's32[1]{0}', space=sflag, size = 0x4, scoped, tag = 'scoped memory for gnn_softmask_forward.1']
    #allocation8 [shape = 's32[1]{0}', space=sflag, size = 0x4, scoped, tag = 'scoped memory for gnn_softmask_forward.1']
    #allocation9 [shape = 'u8[512]{0}', space=smem, size = 0x200, scoped, tag = 'input window, operand 1, single buffered']
    #allocation10 [shape = 's32[1]{0}', space=sflag, size = 0x4, scoped, tag = 'scoped memory for gnn_softmask_forward.1']
    #allocation11 [shape = 'u8[65536]{0}', space=vmem, size = 0x10000, scoped, tag = 'input window, operand 3, single buffered']
    #allocation12 [shape = 'u8[196608]{0}', space=vmem, size = 0x30000, scoped, tag = 'input window, operand 5, single buffered']
    #allocation13 [shape = 's32[1]{0}', space=sflag, size = 0x4, scoped, tag = 'scoped memory for gnn_softmask_forward.1']
    #allocation14 [shape = 'u8[65536]{0}', space=vmem, size = 0x10000, scoped, tag = 'input window, operand 7, single buffered']
    #allocation15 [shape = 'u8[65536]{0}', space=vmem, size = 0x10000, scoped, tag = 'input window, operand 8, single buffered']
    #allocation16 [shape = 's32[1]{0}', space=sflag, size = 0x4, scoped, tag = 'scoped memory for gnn_softmask_forward.1']
    #allocation17 [shape = 'u8[65536]{0}', space=vmem, size = 0x10000, scoped, tag = 'input window, operand 10, single buffered']
    #allocation18 [shape = 'u8[65536]{0}', space=vmem, size = 0x10000, scoped, tag = 'input window, operand 12, single buffered']
    #allocation19 [shape = 's32[1]{0}', space=sflag, size = 0x4, scoped, tag = 'scoped memory for gnn_softmask_forward.1']
    #allocation20 [shape = 'u8[65536]{0}', space=vmem, size = 0x10000, scoped, tag = 'input window, operand 14, single buffered']
    #allocation21 [shape = 'u8[4096]{0}', space=vmem, size = 0x1000, scoped, tag = 'output window, operand 0, single buffered']
    #allocation22 [shape = 'u8[512]{0}', space=vmem, size = 0x400, scoped, tag = 'output window, operand 2, single buffered']
    #allocation23 [shape = 's32[1]{0}', space=sflag, size = 0x4, scoped, tag = 'scoped memory for gnn_softmask_forward.1']
    %24 = vsyncpa [#allocation8], 0
    %25 = vsyncpa [#allocation10], 0
    %26 = vsyncpa [#allocation6], 0
    %27 = vsyncpa [#allocation13], 0
    %28 = vsyncpa [#allocation16], 0
    %29 = vsyncpa [#allocation19], 0
    %30 = vsyncpa [#allocation7], 0
    %31 = vsyncpa [#allocation23], 0
    // Predicated region
    $region2: #{gnn_softmask_forward.1} parent=1 // pred_check
      _
    $region3: #{gnn_softmask_forward.1} parent=1 // pred_check_branch
      %33 = sbr.rel (0) target = $region5
    $region4: #{gnn_softmask_forward.1} parent=1 // pred_region
      %s35 = ssub.s32 16, 16
      %36 = vsyncadd [#allocation8], %s35
      %s38 = sshll.u32 %s0, 4
      %s39 = int_to_ptr.vmem [resolvable:$true] %s38
      %41 = dma.vmem_to_smem %s39, 16, [#allocation5], [#allocation8]
    $region5: #{gnn_softmask_forward.1} parent=1 // pred_fallthru
      _
    // Predicated region
    $region6: #{gnn_softmask_forward.1} parent=1 // pred_check
      _
    $region7: #{gnn_softmask_forward.1} parent=1 // pred_check_branch
      %43 = sbr.rel (0) target = $region9
    $region8: #{gnn_softmask_forward.1} parent=1 // pred_region
      %s45 = ssub.s32 16, 16
      %46 = vsyncadd [#allocation10], %s45
      %s48 = sshll.u32 %s1, 4
      %s49 = int_to_ptr.vmem [resolvable:$true] %s48
      %51 = dma.vmem_to_smem %s49, 16, [#allocation9], [#allocation10]
    $region9: #{gnn_softmask_forward.1} parent=1 // pred_fallthru
      _
    // Predicated region
    $region10: #{gnn_softmask_forward.1} parent=1 // pred_check
      _
    $region11: #{gnn_softmask_forward.1} parent=1 // pred_check_branch
      %53 = sbr.rel (0) target = $region13
    $region12: #{gnn_softmask_forward.1} parent=1 // pred_region
      _
    $region13: #{gnn_softmask_forward.1} parent=1 // pred_fallthru
      _
    // Predicated region
    $region14: #{gnn_softmask_forward.1} parent=1 // pred_check
      _
    $region15: #{gnn_softmask_forward.1} parent=1 // pred_check_branch
      %55 = sbr.rel (0) target = $region17
    $region16: #{gnn_softmask_forward.1} parent=1 // pred_region
      %s57 = ssub.s32 2048, 2048
      %58 = vsyncadd [#allocation6], %s57
      %s59 = sshll.u32 [#allocation11], 4
      %s60 = int_to_ptr.vmem [resolvable:$true] %s59
      %65 = dma.hbm_to_vmem [thread:$0]  %s3, 2048, %s60, [#allocation6], 128, 128, 8
    $region17: #{gnn_softmask_forward.1} parent=1 // pred_fallthru
      _
    // Predicated region
    $region18: #{gnn_softmask_forward.1} parent=1 // pred_check
      _
    $region19: #{gnn_softmask_forward.1} parent=1 // pred_check_branch
      %67 = sbr.rel (0) target = $region21
    $region20: #{gnn_softmask_forward.1} parent=1 // pred_region
      _
    $region21: #{gnn_softmask_forward.1} parent=1 // pred_fallthru
      _
    // Predicated region
    $region22: #{gnn_softmask_forward.1} parent=1 // pred_check
      _
    $region23: #{gnn_softmask_forward.1} parent=1 // pred_check_branch
      %69 = sbr.rel (0) target = $region25
    $region24: #{gnn_softmask_forward.1} parent=1 // pred_region
      %s71 = ssub.s32 6144, 6144
      %72 = vsyncadd [#allocation13], %s71
      %s73 = sshll.u32 [#allocation12], 4
      %s74 = int_to_ptr.vmem [resolvable:$true] %s73
      %79 = dma.hbm_to_vmem [thread:$0]  %s5, 6144, %s74, [#allocation13], 128, 128, 8
    $region25: #{gnn_softmask_forward.1} parent=1 // pred_fallthru
      _
    // Predicated region
    $region26: #{gnn_softmask_forward.1} parent=1 // pred_check
      _
    $region27: #{gnn_softmask_forward.1} parent=1 // pred_check_branch
      %81 = sbr.rel (0) target = $region29
    $region28: #{gnn_softmask_forward.1} parent=1 // pred_region
      _
    $region29: #{gnn_softmask_forward.1} parent=1 // pred_fallthru
      _
    // Predicated region
    $region30: #{gnn_softmask_forward.1} parent=1 // pred_check
      _
    $region31: #{gnn_softmask_forward.1} parent=1 // pred_check_branch
      %83 = sbr.rel (0) target = $region33
    $region32: #{gnn_softmask_forward.1} parent=1 // pred_region
      %s85 = ssub.s32 2048, 2048
      %86 = vsyncadd [#allocation13], %s85
      %s87 = sshll.u32 [#allocation14], 4
      %s88 = int_to_ptr.vmem [resolvable:$true] %s87
      %93 = dma.hbm_to_vmem [thread:$0]  %s7, 2048, %s88, [#allocation13], 128, 128, 8
    $region33: #{gnn_softmask_forward.1} parent=1 // pred_fallthru
      _
    // Predicated region
    $region34: #{gnn_softmask_forward.1} parent=1 // pred_check
      _
    $region35: #{gnn_softmask_forward.1} parent=1 // pred_check_branch
      %95 = sbr.rel (0) target = $region37
    $region36: #{gnn_softmask_forward.1} parent=1 // pred_region
      %s97 = ssub.s32 2048, 2048
      %98 = vsyncadd [#allocation16], %s97
      %s99 = sshll.u32 [#allocation15], 4
      %s100 = int_to_ptr.vmem [resolvable:$true] %s99
      %105 = dma.hbm_to_vmem [thread:$0]  %s8, 2048, %s100, [#allocation16], 128, 128, 8
    $region37: #{gnn_softmask_forward.1} parent=1 // pred_fallthru
      _
    // Predicated region
    $region38: #{gnn_softmask_forward.1} parent=1 // pred_check
      _
    $region39: #{gnn_softmask_forward.1} parent=1 // pred_check_branch
      %107 = sbr.rel (0) target = $region41
    $region40: #{gnn_softmask_forward.1} parent=1 // pred_region
      _
    $region41: #{gnn_softmask_forward.1} parent=1 // pred_fallthru
      _
    // Predicated region
    $region42: #{gnn_softmask_forward.1} parent=1 // pred_check
      _
    $region43: #{gnn_softmask_forward.1} parent=1 // pred_check_branch
      %109 = sbr.rel (0) target = $region45
    $region44: #{gnn_softmask_forward.1} parent=1 // pred_region
      %s111 = ssub.s32 2048, 2048
      %112 = vsyncadd [#allocation16], %s111
      %s113 = sshll.u32 [#allocation17], 4
      %s114 = int_to_ptr.vmem [resolvable:$true] %s113
      %119 = dma.hbm_to_vmem [thread:$0]  %s10, 2048, %s114, [#allocation16], 128, 128, 8
    $region45: #{gnn_softmask_forward.1} parent=1 // pred_fallthru
      _
    // Predicated region
    $region46: #{gnn_softmask_forward.1} parent=1 // pred_check
      _
    $region47: #{gnn_softmask_forward.1} parent=1 // pred_check_branch
      %121 = sbr.rel (0) target = $region49
    $region48: #{gnn_softmask_forward.1} parent=1 // pred_region
      _
    $region49: #{gnn_softmask_forward.1} parent=1 // pred_fallthru
      _
    // Predicated region
    $region50: #{gnn_softmask_forward.1} parent=1 // pred_check
      _
    $region51: #{gnn_softmask_forward.1} parent=1 // pred_check_branch
      %123 = sbr.rel (0) target = $region53
    $region52: #{gnn_softmask_forward.1} parent=1 // pred_region
      %s125 = ssub.s32 2048, 2048
      %126 = vsyncadd [#allocation19], %s125
      %s127 = sshll.u32 [#allocation18], 4
      %s128 = int_to_ptr.vmem [resolvable:$true] %s127
      %133 = dma.hbm_to_vmem [thread:$0]  %s12, 2048, %s128, [#allocation19], 128, 128, 8
    $region53: #{gnn_softmask_forward.1} parent=1 // pred_fallthru
      _
    // Predicated region
    $region54: #{gnn_softmask_forward.1} parent=1 // pred_check
      _
    $region55: #{gnn_softmask_forward.1} parent=1 // pred_check_branch
      %135 = sbr.rel (0) target = $region57
    $region56: #{gnn_softmask_forward.1} parent=1 // pred_region
      _
    $region57: #{gnn_softmask_forward.1} parent=1 // pred_fallthru
      _
    // Predicated region
    $region58: #{gnn_softmask_forward.1} parent=1 // pred_check
      _
    $region59: #{gnn_softmask_forward.1} parent=1 // pred_check_branch
      %137 = sbr.rel (0) target = $region61
    $region60: #{gnn_softmask_forward.1} parent=1 // pred_region
      %s139 = ssub.s32 2048, 2048
      %140 = vsyncadd [#allocation19], %s139
      %s141 = sshll.u32 [#allocation20], 4
      %s142 = int_to_ptr.vmem [resolvable:$true] %s141
      %147 = dma.hbm_to_vmem [thread:$0]  %s14, 2048, %s142, [#allocation19], 128, 128, 8
    $region61: #{gnn_softmask_forward.1} parent=1 // pred_fallthru
      _
    // Predicated region
    $region62: #{gnn_softmask_forward.1} parent=1 // pred_check
      _
    $region63: #{gnn_softmask_forward.1} parent=1 // pred_check_branch
      %149 = sbr.rel (0) target = $region65
    $region64: #{gnn_softmask_forward.1} parent=1 // pred_region
      _
    $region65: #{gnn_softmask_forward.1} parent=1 // pred_fallthru
      _
    // Predicated region
    $region66: #{gnn_softmask_forward.1} parent=1 // pred_check
      _
    $region67: #{gnn_softmask_forward.1} parent=1 // pred_check_branch
      %151 = sbr.rel (0) target = $region69
    $region68: #{gnn_softmask_forward.1} parent=1 // pred_region
      %152 = dma.done [#allocation8], 16
    $region69: #{gnn_softmask_forward.1} parent=1 // pred_fallthru
      _
    // Predicated region
    $region70: #{gnn_softmask_forward.1} parent=1 // pred_check
      _
    $region71: #{gnn_softmask_forward.1} parent=1 // pred_check_branch
      %154 = sbr.rel (0) target = $region73
    $region72: #{gnn_softmask_forward.1} parent=1 // pred_region
      %155 = dma.done [#allocation10], 16
    $region73: #{gnn_softmask_forward.1} parent=1 // pred_fallthru
      _
    // Predicated region
    $region74: #{gnn_softmask_forward.1} parent=1 // pred_check
      _
    $region75: #{gnn_softmask_forward.1} parent=1 // pred_check_branch
      %157 = sbr.rel (0) target = $region77
    $region76: #{gnn_softmask_forward.1} parent=1 // pred_region
      %158 = dma.done [#allocation6], 2048
    $region77: #{gnn_softmask_forward.1} parent=1 // pred_fallthru
      _
    // Predicated region
    $region78: #{gnn_softmask_forward.1} parent=1 // pred_check
      _
    $region79: #{gnn_softmask_forward.1} parent=1 // pred_check_branch
      %160 = sbr.rel (0) target = $region81
    $region80: #{gnn_softmask_forward.1} parent=1 // pred_region
      %161 = dma.done [#allocation13], 6144
    $region81: #{gnn_softmask_forward.1} parent=1 // pred_fallthru
      _
    // Predicated region
    $region82: #{gnn_softmask_forward.1} parent=1 // pred_check
      _
    $region83: #{gnn_softmask_forward.1} parent=1 // pred_check_branch
      %163 = sbr.rel (0) target = $region85
    $region84: #{gnn_softmask_forward.1} parent=1 // pred_region
      %164 = dma.done [#allocation13], 2048
    $region85: #{gnn_softmask_forward.1} parent=1 // pred_fallthru
      _
    // Predicated region
    $region86: #{gnn_softmask_forward.1} parent=1 // pred_check
      _
    $region87: #{gnn_softmask_forward.1} parent=1 // pred_check_branch
      %166 = sbr.rel (0) target = $region89
    $region88: #{gnn_softmask_forward.1} parent=1 // pred_region
      %167 = dma.done [#allocation16], 2048
    $region89: #{gnn_softmask_forward.1} parent=1 // pred_fallthru
      _
    // Predicated region
    $region90: #{gnn_softmask_forward.1} parent=1 // pred_check
      _
    $region91: #{gnn_softmask_forward.1} parent=1 // pred_check_branch
      %169 = sbr.rel (0) target = $region93
    $region92: #{gnn_softmask_forward.1} parent=1 // pred_region
      %170 = dma.done [#allocation16], 2048
    $region93: #{gnn_softmask_forward.1} parent=1 // pred_fallthru
      _
    // Predicated region
    $region94: #{gnn_softmask_forward.1} parent=1 // pred_check
      _
    $region95: #{gnn_softmask_forward.1} parent=1 // pred_check_branch
      %172 = sbr.rel (0) target = $region97
    $region96: #{gnn_softmask_forward.1} parent=1 // pred_region
      %173 = dma.done [#allocation19], 2048
    $region97: #{gnn_softmask_forward.1} parent=1 // pred_fallthru
      _
    // Predicated region
    $region98: #{gnn_softmask_forward.1} parent=1 // pred_check
      _
    $region99: #{gnn_softmask_forward.1} parent=1 // pred_check_branch
      %175 = sbr.rel (0) target = $region101
    $region100: #{gnn_softmask_forward.1} parent=1 // pred_region
      %176 = dma.done [#allocation19], 2048
    $region101: #{gnn_softmask_forward.1} parent=1 // pred_fallthru
      _
    %177 = sfence
    %v178 = vld [vmem:[%s2] sm:$0xff]
    %v179 = vld [vmem:[#allocation11] sm:$0xff]
    %v180 = vld [vmem:[#allocation11 + $0x8] sm:$0xff]
    %v181 = vld [vmem:[#allocation11 + $0x10] sm:$0xff]
    %v182 = vld [vmem:[#allocation11 + $0x18] sm:$0xff]
    %v183 = vld [vmem:[#allocation11 + $0x20] sm:$0xff]
    %v184 = vld [vmem:[#allocation11 + $0x28] sm:$0xff]
    %v185 = vld [vmem:[#allocation11 + $0x30] sm:$0xff]
    %v186 = vld [vmem:[#allocation11 + $0x38] sm:$0xff]
    %v187 = vld [vmem:[#allocation11 + $0x40] sm:$0xff]
    %v188 = vld [vmem:[#allocation11 + $0x48] sm:$0xff]
    %v189 = vld [vmem:[#allocation11 + $0x50] sm:$0xff]
    %v190 = vld [vmem:[#allocation11 + $0x58] sm:$0xff]
    %v191 = vld [vmem:[#allocation11 + $0x60] sm:$0xff]
    %v192 = vld [vmem:[#allocation11 + $0x68] sm:$0xff]
    %v193 = vld [vmem:[#allocation11 + $0x70] sm:$0xff]
    %v194 = vld [vmem:[#allocation11 + $0x78] sm:$0xff]
    %v195 = vld [vmem:[%s4] sm:$0x1]
    %v197 = vlaneseq
    %v198 = vshrl.u32 %v197, 7
    %v199 = vsub.s32 0, %v198
    %v200 = vrot.slane %v195, %v199
    %202 = vmatprep.subr.mxu0 0.0
    %203 = vmatpush1.msra.mxu0 %v179
    %204 = vmatprep.subr.mxu0 0.0
    %205 = vmatpush1.msra.mxu0 %v180
    %206 = vmatprep.subr.mxu0 0.0
    %207 = vmatpush1.msra.mxu0 %v181
    %208 = vmatprep.subr.mxu0 0.0
    %209 = vmatpush1.msra.mxu0 %v182
    %210 = vmatprep.subr.mxu0 0.0
    %211 = vmatpush1.msra.mxu0 %v183
    %212 = vmatprep.subr.mxu0 0.0
    %213 = vmatpush1.msra.mxu0 %v184
    %214 = vmatprep.subr.mxu0 0.0
    %215 = vmatpush1.msra.mxu0 %v185
    %216 = vmatprep.subr.mxu0 0.0
    %217 = vmatpush1.msra.mxu0 %v186
    %218 = vmatprep.subr.mxu0 0.0
    %219 = vmatpush1.msra.mxu0 %v187
    %220 = vmatprep.subr.mxu0 0.0
    %221 = vmatpush1.msra.mxu0 %v188
    %222 = vmatprep.subr.mxu0 0.0
    %223 = vmatpush1.msra.mxu0 %v189
    %224 = vmatprep.subr.mxu0 0.0
    %225 = vmatpush1.msra.mxu0 %v190
    %226 = vmatprep.subr.mxu0 0.0
    %227 = vmatpush1.msra.mxu0 %v191
    %228 = vmatprep.subr.mxu0 0.0
    %229 = vmatpush1.msra.mxu0 %v192
    %230 = vmatprep.subr.mxu0 0.0
    %231 = vmatpush1.msra.mxu0 %v193
    %232 = vmatprep.subr.mxu0 0.0
    %233 = vmatpush1.msra.mxu0 %v194
    %234 = vmatprep.subr.mxu0 0.0
    %235 = vmatpush1.msra.mxu0 0.0
    %236 = vmatprep.subr.mxu0 0.0
    %237 = vmatpush1.msra.mxu0 0.0
    %238 = vmatprep.subr.mxu0 0.0
    %239 = vmatpush1.msra.mxu0 0.0
    %240 = vmatprep.subr.mxu0 0.0
    %241 = vmatpush1.msra.mxu0 0.0
    %242 = vmatprep.subr.mxu0 0.0
    %243 = vmatpush1.msra.mxu0 0.0
    %244 = vmatprep.subr.mxu0 0.0
    %245 = vmatpush1.msra.mxu0 0.0
    %246 = vmatprep.subr.mxu0 0.0
    %247 = vmatpush1.msra.mxu0 0.0
    %248 = vmatprep.subr.mxu0 0.0
    %249 = vmatpush1.msra.mxu0 0.0
    %250 = vmatprep.subr.mxu0 0.0
    %251 = vmatpush1.msra.mxu0 0.0
    %252 = vmatprep.subr.mxu0 0.0
    %253 = vmatpush1.msra.mxu0 0.0
    %254 = vmatprep.subr.mxu0 0.0
    %255 = vmatpush1.msra.mxu0 0.0
    %256 = vmatprep.subr.mxu0 0.0
    %257 = vmatpush1.msra.mxu0 0.0
    %258 = vmatprep.subr.mxu0 0.0
    %259 = vmatpush1.msra.mxu0 0.0
    %260 = vmatprep.subr.mxu0 0.0
    %261 = vmatpush1.msra.mxu0 0.0
    %262 = vmatprep.subr.mxu0 0.0
    %263 = vmatpush1.msra.mxu0 0.0
    %264 = vmatprep.subr.mxu0 0.0
    %265 = vmatpush1.msra.mxu0 0.0
    %266 = vmatprep.mubr.f32.mxu0 0.0
    %267 = vmatmul.mubr.f32.gmra.mrb[0].mxu0 %v178
    %v268 = vpop.f32.mrb[0].mxu0
    %v269 = vadd.f32 %v200, %v268
    %v270 = vpop.f32.mrb[0].mxu0
    %271 = vdwg.mxu0
    %v272 = vmax.f32 %v269, 0.0
    %273 = vst [vmem:[#allocation21] sm:$0xff] %v272
    %274 = vst [vmem:[#allocation2] sm:$0xff] 0.0
    %275 = vst [vmem:[#allocation2 + $0x8] sm:$0xff] 0.0
    %276 = vst [vmem:[#allocation3] sm:$0xff] 0.0
    %277 = vst [vmem:[#allocation3 + $0x8] sm:$0xff] 0.0
    %v278 = vld [vmem:[%s9] sm:$0x1]
    %v279 = vld [vmem:[%s11] sm:$0x1]
    loop: start=0, step=1, limit=12
    $region102: #{gnn_softmask_forward.1} parent=1 // loop_pre_header
      _
    $region103: #{gnn_softmask_forward.1} parent=1 // loop_header
      %s281 = sphi 0, %s285
      %p282 = scmp.ge.s32.totalorder %s281, 12
    $region104: #{gnn_softmask_forward.1} parent=1 // loop_header_branch
      %284 = sbr.rel (%p282) target = $region108
    $region105: #{gnn_softmask_forward.1} parent=1 // loop_body
      %s286 = sld [smem:[#allocation5 + %s281]]
      %s287 = sld [smem:[#allocation9 + %s281]]
      %s288 = scalar_lea.vmem [#allocation21], %s286
      %v289 = vld [vmem:[%s288] sm:$0x1]
      %s290 = scalar_lea.vmem [#allocation2], %s281
      %291 = vst [vmem:[%s290] sm:$0x1] %v289
      %s292 = scalar_lea.vmem [#allocation21], %s287
      %v293 = vld [vmem:[%s292] sm:$0x1]
      %s294 = scalar_lea.vmem [#allocation3], %s281
      %295 = vst [vmem:[%s294] sm:$0x1] %v293
    $region106: #{gnn_softmask_forward.1} parent=1 // loop_footer
      %s285 = sadd.s32 1, %s281
    $region107: #{gnn_softmask_forward.1} parent=1 // loop_footer_branch
      %280 = sbr.rel target = $region103
    $region108: #{gnn_softmask_forward.1} parent=1 // loop_exit
      _
    %v296 = vld [vmem:[#allocation2] sm:$0xff]
    %v297 = vld [vmem:[#allocation2 + $0x8] sm:$0xff]
    %v298 = vld [vmem:[#allocation14] sm:$0xff]
    %v299 = vld [vmem:[#allocation14 + $0x8] sm:$0xff]
    %v300 = vld [vmem:[#allocation14 + $0x10] sm:$0xff]
    %v301 = vld [vmem:[#allocation14 + $0x18] sm:$0xff]
    %v302 = vld [vmem:[#allocation14 + $0x20] sm:$0xff]
    %v303 = vld [vmem:[#allocation14 + $0x28] sm:$0xff]
    %v304 = vld [vmem:[#allocation14 + $0x30] sm:$0xff]
    %v305 = vld [vmem:[#allocation14 + $0x38] sm:$0xff]
    %v306 = vld [vmem:[#allocation14 + $0x40] sm:$0xff]
    %v307 = vld [vmem:[#allocation14 + $0x48] sm:$0xff]
    %v308 = vld [vmem:[#allocation14 + $0x50] sm:$0xff]
    %v309 = vld [vmem:[#allocation14 + $0x58] sm:$0xff]
    %v310 = vld [vmem:[#allocation14 + $0x60] sm:$0xff]
    %v311 = vld [vmem:[#allocation14 + $0x68] sm:$0xff]
    %v312 = vld [vmem:[#allocation14 + $0x70] sm:$0xff]
    %v313 = vld [vmem:[#allocation14 + $0x78] sm:$0xff]
    %v314 = vld [vmem:[#allocation3] sm:$0xff]
    %v315 = vld [vmem:[#allocation3 + $0x8] sm:$0xff]
    %v316 = vld [vmem:[#allocation15] sm:$0xff]
    %v317 = vld [vmem:[#allocation15 + $0x8] sm:$0xff]
    %v318 = vld [vmem:[#allocation15 + $0x10] sm:$0xff]
    %v319 = vld [vmem:[#allocation15 + $0x18] sm:$0xff]
    %v320 = vld [vmem:[#allocation15 + $0x20] sm:$0xff]
    %v321 = vld [vmem:[#allocation15 + $0x28] sm:$0xff]
    %v322 = vld [vmem:[#allocation15 + $0x30] sm:$0xff]
    %v323 = vld [vmem:[#allocation15 + $0x38] sm:$0xff]
    %v324 = vld [vmem:[#allocation15 + $0x40] sm:$0xff]
    %v325 = vld [vmem:[#allocation15 + $0x48] sm:$0xff]
    %v326 = vld [vmem:[#allocation15 + $0x50] sm:$0xff]
    %v327 = vld [vmem:[#allocation15 + $0x58] sm:$0xff]
    %v328 = vld [vmem:[#allocation15 + $0x60] sm:$0xff]
    %v329 = vld [vmem:[#allocation15 + $0x68] sm:$0xff]
    %v330 = vld [vmem:[#allocation15 + $0x70] sm:$0xff]
    %v331 = vld [vmem:[#allocation15 + $0x78] sm:$0xff]
    %332 = vmatprep.subr.mxu0 0.0
    %333 = vmatpush1.msra.mxu0 %v316
    %334 = vmatprep.subr.mxu0 0.0
    %335 = vmatpush1.msra.mxu0 %v317
    %336 = vmatprep.subr.mxu0 0.0
    %337 = vmatpush1.msra.mxu0 %v318
    %338 = vmatprep.subr.mxu0 0.0
    %339 = vmatpush1.msra.mxu0 %v319
    %340 = vmatprep.subr.mxu0 0.0
    %341 = vmatpush1.msra.mxu0 %v320
    %342 = vmatprep.subr.mxu0 0.0
    %343 = vmatpush1.msra.mxu0 %v321
    %344 = vmatprep.subr.mxu0 0.0
    %345 = vmatpush1.msra.mxu0 %v322
    %346 = vmatprep.subr.mxu0 0.0
    %347 = vmatpush1.msra.mxu0 %v323
    %348 = vmatprep.subr.mxu0 0.0
    %349 = vmatpush1.msra.mxu0 %v324
    %350 = vmatprep.subr.mxu0 0.0
    %351 = vmatpush1.msra.mxu0 %v325
    %352 = vmatprep.subr.mxu0 0.0
    %353 = vmatpush1.msra.mxu0 %v326
    %354 = vmatprep.subr.mxu0 0.0
    %355 = vmatpush1.msra.mxu0 %v327
    %356 = vmatprep.subr.mxu0 0.0
    %357 = vmatpush1.msra.mxu0 %v328
    %358 = vmatprep.subr.mxu0 0.0
    %359 = vmatpush1.msra.mxu0 %v329
    %360 = vmatprep.subr.mxu0 0.0
    %361 = vmatpush1.msra.mxu0 %v330
    %362 = vmatprep.subr.mxu0 0.0
    %363 = vmatpush1.msra.mxu0 %v331
    %364 = vmatprep.subr.mxu0 0.0
    %365 = vmatpush1.msra.mxu0 0.0
    %366 = vmatprep.subr.mxu0 0.0
    %367 = vmatpush1.msra.mxu0 0.0
    %368 = vmatprep.subr.mxu0 0.0
    %369 = vmatpush1.msra.mxu0 0.0
    %370 = vmatprep.subr.mxu0 0.0
    %371 = vmatpush1.msra.mxu0 0.0
    %372 = vmatprep.subr.mxu0 0.0
    %373 = vmatpush1.msra.mxu0 0.0
    %374 = vmatprep.subr.mxu0 0.0
    %375 = vmatpush1.msra.mxu0 0.0
    %376 = vmatprep.subr.mxu0 0.0
    %377 = vmatpush1.msra.mxu0 0.0
    %378 = vmatprep.subr.mxu0 0.0
    %379 = vmatpush1.msra.mxu0 0.0
    %380 = vmatprep.subr.mxu0 0.0
    %381 = vmatpush1.msra.mxu0 0.0
    %382 = vmatprep.subr.mxu0 0.0
    %383 = vmatpush1.msra.mxu0 0.0
    %384 = vmatprep.subr.mxu0 0.0
    %385 = vmatpush1.msra.mxu0 0.0
    %386 = vmatprep.subr.mxu0 0.0
    %387 = vmatpush1.msra.mxu0 0.0
    %388 = vmatprep.subr.mxu0 0.0
    %389 = vmatpush1.msra.mxu0 0.0
    %390 = vmatprep.subr.mxu0 0.0
    %391 = vmatpush1.msra.mxu0 0.0
    %392 = vmatprep.subr.mxu0 0.0
    %393 = vmatpush1.msra.mxu0 0.0
    %394 = vmatprep.subr.mxu0 0.0
    %395 = vmatpush1.msra.mxu0 0.0
    %396 = vmatprep.mubr.f32.mxu0 0.0
    %397 = vmatmul.mubr.f32.gmra.mrb[0].mxu0 %v314
    %v398 = vpop.f32.mrb[0].mxu0
    %v399 = vadd.f32 0.0, %v398
    %v400 = vpop.f32.mrb[0].mxu0
    %401 = vmatprep.mubr.f32.mxu0 0.0
    %402 = vmatmul.mubr.f32.gmra.mrb[0].mxu0 %v315
    %v403 = vpop.f32.mrb[0].mxu0
    %v404 = vadd.f32 0.0, %v403
    %v405 = vpop.f32.mrb[0].mxu0
    %406 = vdwg.mxu0
    %407 = vmatprep.subr.mxu0 0.0
    %408 = vmatpush1.msra.mxu0 %v298
    %409 = vmatprep.subr.mxu0 0.0
    %410 = vmatpush1.msra.mxu0 %v299
    %411 = vmatprep.subr.mxu0 0.0
    %412 = vmatpush1.msra.mxu0 %v300
    %413 = vmatprep.subr.mxu0 0.0
    %414 = vmatpush1.msra.mxu0 %v301
    %415 = vmatprep.subr.mxu0 0.0
    %416 = vmatpush1.msra.mxu0 %v302
    %417 = vmatprep.subr.mxu0 0.0
    %418 = vmatpush1.msra.mxu0 %v303
    %419 = vmatprep.subr.mxu0 0.0
    %420 = vmatpush1.msra.mxu0 %v304
    %421 = vmatprep.subr.mxu0 0.0
    %422 = vmatpush1.msra.mxu0 %v305
    %423 = vmatprep.subr.mxu0 0.0
    %424 = vmatpush1.msra.mxu0 %v306
    %425 = vmatprep.subr.mxu0 0.0
    %426 = vmatpush1.msra.mxu0 %v307
    %427 = vmatprep.subr.mxu0 0.0
    %428 = vmatpush1.msra.mxu0 %v308
    %429 = vmatprep.subr.mxu0 0.0
    %430 = vmatpush1.msra.mxu0 %v309
    %431 = vmatprep.subr.mxu0 0.0
    %432 = vmatpush1.msra.mxu0 %v310
    %433 = vmatprep.subr.mxu0 0.0
    %434 = vmatpush1.msra.mxu0 %v311
    %435 = vmatprep.subr.mxu0 0.0
    %436 = vmatpush1.msra.mxu0 %v312
    %437 = vmatprep.subr.mxu0 0.0
    %438 = vmatpush1.msra.mxu0 %v313
    %439 = vmatprep.subr.mxu0 0.0
    %440 = vmatpush1.msra.mxu0 0.0
    %441 = vmatprep.subr.mxu0 0.0
    %442 = vmatpush1.msra.mxu0 0.0
    %443 = vmatprep.subr.mxu0 0.0
    %444 = vmatpush1.msra.mxu0 0.0
    %445 = vmatprep.subr.mxu0 0.0
    %446 = vmatpush1.msra.mxu0 0.0
    %447 = vmatprep.subr.mxu0 0.0
    %448 = vmatpush1.msra.mxu0 0.0
    %449 = vmatprep.subr.mxu0 0.0
    %450 = vmatpush1.msra.mxu0 0.0
    %451 = vmatprep.subr.mxu0 0.0
    %452 = vmatpush1.msra.mxu0 0.0
    %453 = vmatprep.subr.mxu0 0.0
    %454 = vmatpush1.msra.mxu0 0.0
    %455 = vmatprep.subr.mxu0 0.0
    %456 = vmatpush1.msra.mxu0 0.0
    %457 = vmatprep.subr.mxu0 0.0
    %458 = vmatpush1.msra.mxu0 0.0
    %459 = vmatprep.subr.mxu0 0.0
    %460 = vmatpush1.msra.mxu0 0.0
    %461 = vmatprep.subr.mxu0 0.0
    %462 = vmatpush1.msra.mxu0 0.0
    %463 = vmatprep.subr.mxu0 0.0
    %464 = vmatpush1.msra.mxu0 0.0
    %465 = vmatprep.subr.mxu0 0.0
    %466 = vmatpush1.msra.mxu0 0.0
    %467 = vmatprep.subr.mxu0 0.0
    %468 = vmatpush1.msra.mxu0 0.0
    %469 = vmatprep.subr.mxu0 0.0
    %470 = vmatpush1.msra.mxu0 0.0
    %471 = vmatprep.mubr.f32.mxu0 0.0
    %472 = vmatmul.mubr.f32.gmra.mrb[0].mxu0 %v296
    %v473 = vpop.f32.mrb[0].mxu0
    %v474 = vadd.f32 %v399, %v473
    %v475 = vpop.f32.mrb[0].mxu0
    %476 = vmatprep.mubr.f32.mxu0 0.0
    %477 = vmatmul.mubr.f32.gmra.mrb[0].mxu0 %v297
    %v478 = vpop.f32.mrb[0].mxu0
    %v479 = vadd.f32 %v404, %v478
    %v480 = vpop.f32.mrb[0].mxu0
    %481 = vdwg.mxu0
    %v483 = vlaneseq
    %v484 = vshrl.u32 %v483, 7
    %v485 = vsub.s32 0, %v484
    %v486 = vrot.slane %v278, %v485
    %v488 = vadd.f32 %v474, %v486
    %v489 = vadd.f32 %v479, %v486
    %v490 = vmax.f32 %v488, 0.0
    %v491 = vmax.f32 %v489, 0.0
    %v492 = vld [vmem:[#allocation17] sm:$0xff]
    %v493 = vld [vmem:[#allocation17 + $0x8] sm:$0xff]
    %v494 = vld [vmem:[#allocation17 + $0x10] sm:$0xff]
    %v495 = vld [vmem:[#allocation17 + $0x18] sm:$0xff]
    %v496 = vld [vmem:[#allocation17 + $0x20] sm:$0xff]
    %v497 = vld [vmem:[#allocation17 + $0x28] sm:$0xff]
    %v498 = vld [vmem:[#allocation17 + $0x30] sm:$0xff]
    %v499 = vld [vmem:[#allocation17 + $0x38] sm:$0xff]
    %v500 = vld [vmem:[#allocation17 + $0x40] sm:$0xff]
    %v501 = vld [vmem:[#allocation17 + $0x48] sm:$0xff]
    %v502 = vld [vmem:[#allocation17 + $0x50] sm:$0xff]
    %v503 = vld [vmem:[#allocation17 + $0x58] sm:$0xff]
    %v504 = vld [vmem:[#allocation17 + $0x60] sm:$0xff]
    %v505 = vld [vmem:[#allocation17 + $0x68] sm:$0xff]
    %v506 = vld [vmem:[#allocation17 + $0x70] sm:$0xff]
    %v507 = vld [vmem:[#allocation17 + $0x78] sm:$0xff]
    %v509 = vlaneseq
    %v510 = vshrl.u32 %v509, 7
    %v511 = vsub.s32 0, %v510
    %v512 = vrot.slane %v279, %v511
    %514 = vmatprep.subr.mxu0 0.0
    %515 = vmatpush1.msra.mxu0 %v492
    %516 = vmatprep.subr.mxu0 0.0
    %517 = vmatpush1.msra.mxu0 %v493
    %518 = vmatprep.subr.mxu0 0.0
    %519 = vmatpush1.msra.mxu0 %v494
    %520 = vmatprep.subr.mxu0 0.0
    %521 = vmatpush1.msra.mxu0 %v495
    %522 = vmatprep.subr.mxu0 0.0
    %523 = vmatpush1.msra.mxu0 %v496
    %524 = vmatprep.subr.mxu0 0.0
    %525 = vmatpush1.msra.mxu0 %v497
    %526 = vmatprep.subr.mxu0 0.0
    %527 = vmatpush1.msra.mxu0 %v498
    %528 = vmatprep.subr.mxu0 0.0
    %529 = vmatpush1.msra.mxu0 %v499
    %530 = vmatprep.subr.mxu0 0.0
    %531 = vmatpush1.msra.mxu0 %v500
    %532 = vmatprep.subr.mxu0 0.0
    %533 = vmatpush1.msra.mxu0 %v501
    %534 = vmatprep.subr.mxu0 0.0
    %535 = vmatpush1.msra.mxu0 %v502
    %536 = vmatprep.subr.mxu0 0.0
    %537 = vmatpush1.msra.mxu0 %v503
    %538 = vmatprep.subr.mxu0 0.0
    %539 = vmatpush1.msra.mxu0 %v504
    %540 = vmatprep.subr.mxu0 0.0
    %541 = vmatpush1.msra.mxu0 %v505
    %542 = vmatprep.subr.mxu0 0.0
    %543 = vmatpush1.msra.mxu0 %v506
    %544 = vmatprep.subr.mxu0 0.0
    %545 = vmatpush1.msra.mxu0 %v507
    %546 = vmatprep.subr.mxu0 0.0
    %547 = vmatpush1.msra.mxu0 0.0
    %548 = vmatprep.subr.mxu0 0.0
    %549 = vmatpush1.msra.mxu0 0.0
    %550 = vmatprep.subr.mxu0 0.0
    %551 = vmatpush1.msra.mxu0 0.0
    %552 = vmatprep.subr.mxu0 0.0
    %553 = vmatpush1.msra.mxu0 0.0
    %554 = vmatprep.subr.mxu0 0.0
    %555 = vmatpush1.msra.mxu0 0.0
    %556 = vmatprep.subr.mxu0 0.0
    %557 = vmatpush1.msra.mxu0 0.0
    %558 = vmatprep.subr.mxu0 0.0
    %559 = vmatpush1.msra.mxu0 0.0
    %560 = vmatprep.subr.mxu0 0.0
    %561 = vmatpush1.msra.mxu0 0.0
    %562 = vmatprep.subr.mxu0 0.0
    %563 = vmatpush1.msra.mxu0 0.0
    %564 = vmatprep.subr.mxu0 0.0
    %565 = vmatpush1.msra.mxu0 0.0
    %566 = vmatprep.subr.mxu0 0.0
    %567 = vmatpush1.msra.mxu0 0.0
    %568 = vmatprep.subr.mxu0 0.0
    %569 = vmatpush1.msra.mxu0 0.0
    %570 = vmatprep.subr.mxu0 0.0
    %571 = vmatpush1.msra.mxu0 0.0
    %572 = vmatprep.subr.mxu0 0.0
    %573 = vmatpush1.msra.mxu0 0.0
    %574 = vmatprep.subr.mxu0 0.0
    %575 = vmatpush1.msra.mxu0 0.0
    %576 = vmatprep.subr.mxu0 0.0
    %577 = vmatpush1.msra.mxu0 0.0
    %578 = vmatprep.mubr.f32.mxu0 0.0
    %579 = vmatmul.mubr.f32.gmra.mrb[0].mxu0 %v490
    %v580 = vpop.f32.mrb[0].mxu0
    %v581 = vadd.f32 %v512, %v580
    %v582 = vpop.f32.mrb[0].mxu0
    %583 = vmatprep.mubr.f32.mxu0 0.0
    %584 = vmatmul.mubr.f32.gmra.mrb[0].mxu0 %v491
    %v585 = vpop.f32.mrb[0].mxu0
    %v586 = vadd.f32 %v512, %v585
    %v587 = vpop.f32.mrb[0].mxu0
    %588 = vdwg.mxu0
    %v589 = vxor.u32 %v581, 2147483648
    %v590 = vxor.u32 %v586, 2147483648
    %v591 = vmul.f32 %v589, 1.442695
    %v592 = vpow.pop %v591
    %v593 = vmul.f32 %v590, 1.442695
    %v594 = vpow.pop %v593
    %v595 = vadd.f32 %v592, 1.0
    %v596 = vadd.f32 %v594, 1.0
    %v597 = vrcp.pop %v595
    %v598 = vmul.f32 1.0, %v597
    %v599 = vrcp.pop %v596
    %v600 = vmul.f32 1.0, %v599
    %v601 = vsub.f32 %v598, 0.5
    %v602 = vsub.f32 %v600, 0.5
    %v603 = vxor.u32 %v601, 2147483648
    %v604 = vxor.u32 %v602, 2147483648
    %v605 = vmul.f32 %v603, 1.442695
    %v606 = vpow.pop %v605
    %v607 = vmul.f32 %v604, 1.442695
    %v608 = vpow.pop %v607
    %v609 = vadd.f32 %v606, 1.0
    %v610 = vadd.f32 %v608, 1.0
    %v611 = vrcp.pop %v609
    %v612 = vmul.f32 1.0, %v611
    %v613 = vrcp.pop %v610
    %v614 = vmul.f32 1.0, %v613
    %615 = vst [vmem:[%s17] sm:$0xff] %v612
    %616 = vst [vmem:[%s17 + $0x8] sm:$0xff] %v614
    %v617 = vld [vmem:[#allocation2] sm:$0xff]
    %v618 = vld [vmem:[#allocation2 + $0x8] sm:$0xff]
    %v619 = vld [vmem:[%s17] sm:$0xff]
    %v620 = vld [vmem:[%s17 + $0x8] sm:$0xff]
    %v621 = vmul.f32 %v617, %v619
    %v622 = vmul.f32 %v618, %v620
    %623 = vst [vmem:[#allocation2] sm:$0xff] %v621
    %624 = vst [vmem:[#allocation2 + $0x8] sm:$0xff] %v622
    %625 = vst [vmem:[#allocation4] sm:$0xff] 0.0
    loop: start=0, step=1, limit=12
    $region109: #{gnn_softmask_forward.1} parent=1 // loop_pre_header
      _
    $region110: #{gnn_softmask_forward.1} parent=1 // loop_header
      %s627 = sphi 0, %s631
      %p628 = scmp.ge.s32.totalorder %s627, 12
    $region111: #{gnn_softmask_forward.1} parent=1 // loop_header_branch
      %630 = sbr.rel (%p628) target = $region115
    $region112: #{gnn_softmask_forward.1} parent=1 // loop_body
      %s632 = sld [smem:[#allocation9 + %s627]]
      %s633 = scalar_lea.vmem [#allocation4], %s632
      %v634 = vld [vmem:[%s633] sm:$0x1]
      %s635 = scalar_lea.vmem [#allocation2], %s627
      %v636 = vld [vmem:[%s635] sm:$0x1]
      %v637 = vadd.f32 %v634, %v636
      %638 = vst [vmem:[%s633] sm:$0x1] %v637
    $region113: #{gnn_softmask_forward.1} parent=1 // loop_footer
      %s631 = sadd.s32 1, %s627
    $region114: #{gnn_softmask_forward.1} parent=1 // loop_footer_branch
      %626 = sbr.rel target = $region110
    $region115: #{gnn_softmask_forward.1} parent=1 // loop_exit
      _
    %v639 = vld [vmem:[#allocation21] sm:$0xff]
    %v640 = vld [vmem:[#allocation4] sm:$0xff]
    %v641 = vadd.f32 %v639, %v640
    %v642 = vld [vmem:[#allocation12] sm:$0xff]
    %v643 = vld [vmem:[#allocation12 + $0x8] sm:$0xff]
    %v644 = vld [vmem:[#allocation12 + $0x10] sm:$0xff]
    %v645 = vld [vmem:[#allocation12 + $0x18] sm:$0xff]
    %v646 = vld [vmem:[#allocation12 + $0x20] sm:$0xff]
    %v647 = vld [vmem:[#allocation12 + $0x28] sm:$0xff]
    %v648 = vld [vmem:[#allocation12 + $0x30] sm:$0xff]
    %v649 = vld [vmem:[#allocation12 + $0x38] sm:$0xff]
    %v650 = vld [vmem:[#allocation12 + $0x40] sm:$0xff]
    %v651 = vld [vmem:[#allocation12 + $0x48] sm:$0xff]
    %v652 = vld [vmem:[#allocation12 + $0x50] sm:$0xff]
    %v653 = vld [vmem:[#allocation12 + $0x58] sm:$0xff]
    %v654 = vld [vmem:[#allocation12 + $0x60] sm:$0xff]
    %v655 = vld [vmem:[#allocation12 + $0x68] sm:$0xff]
    %v656 = vld [vmem:[#allocation12 + $0x70] sm:$0xff]
    %v657 = vld [vmem:[#allocation12 + $0x78] sm:$0xff]
    %v658 = vld [vmem:[%s6] sm:$0x1]
    %v659 = vlaneseq
    %v660 = vshrl.u32 %v659, 7
    %v661 = vsub.s32 0, %v660
    %v662 = vrot.slane %v658, %v661
    %663 = vmatprep.subr.mxu0 0.0
    %664 = vmatpush1.msra.mxu0 %v642
    %665 = vmatprep.subr.mxu0 0.0
    %666 = vmatpush1.msra.mxu0 %v643
    %667 = vmatprep.subr.mxu0 0.0
    %668 = vmatpush1.msra.mxu0 %v644
    %669 = vmatprep.subr.mxu0 0.0
    %670 = vmatpush1.msra.mxu0 %v645
    %671 = vmatprep.subr.mxu0 0.0
    %672 = vmatpush1.msra.mxu0 %v646
    %673 = vmatprep.subr.mxu0 0.0
    %674 = vmatpush1.msra.mxu0 %v647
    %675 = vmatprep.subr.mxu0 0.0
    %676 = vmatpush1.msra.mxu0 %v648
    %677 = vmatprep.subr.mxu0 0.0
    %678 = vmatpush1.msra.mxu0 %v649
    %679 = vmatprep.subr.mxu0 0.0
    %680 = vmatpush1.msra.mxu0 %v650
    %681 = vmatprep.subr.mxu0 0.0
    %682 = vmatpush1.msra.mxu0 %v651
    %683 = vmatprep.subr.mxu0 0.0
    %684 = vmatpush1.msra.mxu0 %v652
    %685 = vmatprep.subr.mxu0 0.0
    %686 = vmatpush1.msra.mxu0 %v653
    %687 = vmatprep.subr.mxu0 0.0
    %688 = vmatpush1.msra.mxu0 %v654
    %689 = vmatprep.subr.mxu0 0.0
    %690 = vmatpush1.msra.mxu0 %v655
    %691 = vmatprep.subr.mxu0 0.0
    %692 = vmatpush1.msra.mxu0 %v656
    %693 = vmatprep.subr.mxu0 0.0
    %694 = vmatpush1.msra.mxu0 %v657
    %695 = vmatprep.subr.mxu0 0.0
    %696 = vmatpush1.msra.mxu0 0.0
    %697 = vmatprep.subr.mxu0 0.0
    %698 = vmatpush1.msra.mxu0 0.0
    %699 = vmatprep.subr.mxu0 0.0
    %700 = vmatpush1.msra.mxu0 0.0
    %701 = vmatprep.subr.mxu0 0.0
    %702 = vmatpush1.msra.mxu0 0.0
    %703 = vmatprep.subr.mxu0 0.0
    %704 = vmatpush1.msra.mxu0 0.0
    %705 = vmatprep.subr.mxu0 0.0
    %706 = vmatpush1.msra.mxu0 0.0
    %707 = vmatprep.subr.mxu0 0.0
    %708 = vmatpush1.msra.mxu0 0.0
    %709 = vmatprep.subr.mxu0 0.0
    %710 = vmatpush1.msra.mxu0 0.0
    %711 = vmatprep.subr.mxu0 0.0
    %712 = vmatpush1.msra.mxu0 0.0
    %713 = vmatprep.subr.mxu0 0.0
    %714 = vmatpush1.msra.mxu0 0.0
    %715 = vmatprep.subr.mxu0 0.0
    %716 = vmatpush1.msra.mxu0 0.0
    %717 = vmatprep.subr.mxu0 0.0
    %718 = vmatpush1.msra.mxu0 0.0
    %719 = vmatprep.subr.mxu0 0.0
    %720 = vmatpush1.msra.mxu0 0.0
    %721 = vmatprep.subr.mxu0 0.0
    %722 = vmatpush1.msra.mxu0 0.0
    %723 = vmatprep.subr.mxu0 0.0
    %724 = vmatpush1.msra.mxu0 0.0
    %725 = vmatprep.subr.mxu0 0.0
    %726 = vmatpush1.msra.mxu0 0.0
    %727 = vmatprep.mubr.f32.mxu0 0.0
    %728 = vmatmul.mubr.f32.gmra.mrb[0].mxu0 %v641
    %v729 = vpop.f32.mrb[0].mxu0
    %v730 = vadd.f32 %v662, %v729
    %v731 = vpop.f32.mrb[0].mxu0
    %732 = vdwg.mxu0
    %v733 = vmax.f32 %v730, 0.0
    %734 = vst [vmem:[#allocation21] sm:$0xff] %v733
    loop: start=0, step=1, limit=12
    $region116: #{gnn_softmask_forward.1} parent=1 // loop_pre_header
      _
    $region117: #{gnn_softmask_forward.1} parent=1 // loop_header
      %s736 = sphi 0, %s740
      %p737 = scmp.ge.s32.totalorder %s736, 12
    $region118: #{gnn_softmask_forward.1} parent=1 // loop_header_branch
      %739 = sbr.rel (%p737) target = $region122
    $region119: #{gnn_softmask_forward.1} parent=1 // loop_body
      %s741 = sld [smem:[#allocation5 + %s736]]
      %s742 = sld [smem:[#allocation9 + %s736]]
      %s743 = scalar_lea.vmem [#allocation21], %s741
      %v744 = vld [vmem:[%s743] sm:$0x1]
      %s745 = scalar_lea.vmem [#allocation2], %s736
      %746 = vst [vmem:[%s745] sm:$0x1] %v744
      %s747 = scalar_lea.vmem [#allocation21], %s742
      %v748 = vld [vmem:[%s747] sm:$0x1]
      %s749 = scalar_lea.vmem [#allocation3], %s736
      %750 = vst [vmem:[%s749] sm:$0x1] %v748
    $region120: #{gnn_softmask_forward.1} parent=1 // loop_footer
      %s740 = sadd.s32 1, %s736
    $region121: #{gnn_softmask_forward.1} parent=1 // loop_footer_branch
      %735 = sbr.rel target = $region117
    $region122: #{gnn_softmask_forward.1} parent=1 // loop_exit
      _
    %v751 = vld [vmem:[#allocation2] sm:$0xff]
    %v752 = vld [vmem:[#allocation2 + $0x8] sm:$0xff]
    %v753 = vld [vmem:[#allocation14] sm:$0xff]
    %v754 = vld [vmem:[#allocation14 + $0x8] sm:$0xff]
    %v755 = vld [vmem:[#allocation14 + $0x10] sm:$0xff]
    %v756 = vld [vmem:[#allocation14 + $0x18] sm:$0xff]
    %v757 = vld [vmem:[#allocation14 + $0x20] sm:$0xff]
    %v758 = vld [vmem:[#allocation14 + $0x28] sm:$0xff]
    %v759 = vld [vmem:[#allocation14 + $0x30] sm:$0xff]
    %v760 = vld [vmem:[#allocation14 + $0x38] sm:$0xff]
    %v761 = vld [vmem:[#allocation14 + $0x40] sm:$0xff]
    %v762 = vld [vmem:[#allocation14 + $0x48] sm:$0xff]
    %v763 = vld [vmem:[#allocation14 + $0x50] sm:$0xff]
    %v764 = vld [vmem:[#allocation14 + $0x58] sm:$0xff]
    %v765 = vld [vmem:[#allocation14 + $0x60] sm:$0xff]
    %v766 = vld [vmem:[#allocation14 + $0x68] sm:$0xff]
    %v767 = vld [vmem:[#allocation14 + $0x70] sm:$0xff]
    %v768 = vld [vmem:[#allocation14 + $0x78] sm:$0xff]
    %v769 = vld [vmem:[#allocation3] sm:$0xff]
    %v770 = vld [vmem:[#allocation3 + $0x8] sm:$0xff]
    %v771 = vld [vmem:[#allocation15] sm:$0xff]
    %v772 = vld [vmem:[#allocation15 + $0x8] sm:$0xff]
    %v773 = vld [vmem:[#allocation15 + $0x10] sm:$0xff]
    %v774 = vld [vmem:[#allocation15 + $0x18] sm:$0xff]
    %v775 = vld [vmem:[#allocation15 + $0x20] sm:$0xff]
    %v776 = vld [vmem:[#allocation15 + $0x28] sm:$0xff]
    %v777 = vld [vmem:[#allocation15 + $0x30] sm:$0xff]
    %v778 = vld [vmem:[#allocation15 + $0x38] sm:$0xff]
    %v779 = vld [vmem:[#allocation15 + $0x40] sm:$0xff]
    %v780 = vld [vmem:[#allocation15 + $0x48] sm:$0xff]
    %v781 = vld [vmem:[#allocation15 + $0x50] sm:$0xff]
    %v782 = vld [vmem:[#allocation15 + $0x58] sm:$0xff]
    %v783 = vld [vmem:[#allocation15 + $0x60] sm:$0xff]
    %v784 = vld [vmem:[#allocation15 + $0x68] sm:$0xff]
    %v785 = vld [vmem:[#allocation15 + $0x70] sm:$0xff]
    %v786 = vld [vmem:[#allocation15 + $0x78] sm:$0xff]
    %787 = vmatprep.subr.mxu0 0.0
    %788 = vmatpush1.msra.mxu0 %v771
    %789 = vmatprep.subr.mxu0 0.0
    %790 = vmatpush1.msra.mxu0 %v772
    %791 = vmatprep.subr.mxu0 0.0
    %792 = vmatpush1.msra.mxu0 %v773
    %793 = vmatprep.subr.mxu0 0.0
    %794 = vmatpush1.msra.mxu0 %v774
    %795 = vmatprep.subr.mxu0 0.0
    %796 = vmatpush1.msra.mxu0 %v775
    %797 = vmatprep.subr.mxu0 0.0
    %798 = vmatpush1.msra.mxu0 %v776
    %799 = vmatprep.subr.mxu0 0.0
    %800 = vmatpush1.msra.mxu0 %v777
    %801 = vmatprep.subr.mxu0 0.0
    %802 = vmatpush1.msra.mxu0 %v778
    %803 = vmatprep.subr.mxu0 0.0
    %804 = vmatpush1.msra.mxu0 %v779
    %805 = vmatprep.subr.mxu0 0.0
    %806 = vmatpush1.msra.mxu0 %v780
    %807 = vmatprep.subr.mxu0 0.0
    %808 = vmatpush1.msra.mxu0 %v781
    %809 = vmatprep.subr.mxu0 0.0
    %810 = vmatpush1.msra.mxu0 %v782
    %811 = vmatprep.subr.mxu0 0.0
    %812 = vmatpush1.msra.mxu0 %v783
    %813 = vmatprep.subr.mxu0 0.0
    %814 = vmatpush1.msra.mxu0 %v784
    %815 = vmatprep.subr.mxu0 0.0
    %816 = vmatpush1.msra.mxu0 %v785
    %817 = vmatprep.subr.mxu0 0.0
    %818 = vmatpush1.msra.mxu0 %v786
    %819 = vmatprep.subr.mxu0 0.0
    %820 = vmatpush1.msra.mxu0 0.0
    %821 = vmatprep.subr.mxu0 0.0
    %822 = vmatpush1.msra.mxu0 0.0
    %823 = vmatprep.subr.mxu0 0.0
    %824 = vmatpush1.msra.mxu0 0.0
    %825 = vmatprep.subr.mxu0 0.0
    %826 = vmatpush1.msra.mxu0 0.0
    %827 = vmatprep.subr.mxu0 0.0
    %828 = vmatpush1.msra.mxu0 0.0
    %829 = vmatprep.subr.mxu0 0.0
    %830 = vmatpush1.msra.mxu0 0.0
    %831 = vmatprep.subr.mxu0 0.0
    %832 = vmatpush1.msra.mxu0 0.0
    %833 = vmatprep.subr.mxu0 0.0
    %834 = vmatpush1.msra.mxu0 0.0
    %835 = vmatprep.subr.mxu0 0.0
    %836 = vmatpush1.msra.mxu0 0.0
    %837 = vmatprep.subr.mxu0 0.0
    %838 = vmatpush1.msra.mxu0 0.0
    %839 = vmatprep.subr.mxu0 0.0
    %840 = vmatpush1.msra.mxu0 0.0
    %841 = vmatprep.subr.mxu0 0.0
    %842 = vmatpush1.msra.mxu0 0.0
    %843 = vmatprep.subr.mxu0 0.0
    %844 = vmatpush1.msra.mxu0 0.0
    %845 = vmatprep.subr.mxu0 0.0
    %846 = vmatpush1.msra.mxu0 0.0
    %847 = vmatprep.subr.mxu0 0.0
    %848 = vmatpush1.msra.mxu0 0.0
    %849 = vmatprep.subr.mxu0 0.0
    %850 = vmatpush1.msra.mxu0 0.0
    %851 = vmatprep.mubr.f32.mxu0 0.0
    %852 = vmatmul.mubr.f32.gmra.mrb[0].mxu0 %v769
    %v853 = vpop.f32.mrb[0].mxu0
    %v854 = vadd.f32 0.0, %v853
    %v855 = vpop.f32.mrb[0].mxu0
    %856 = vmatprep.mubr.f32.mxu0 0.0
    %857 = vmatmul.mubr.f32.gmra.mrb[0].mxu0 %v770
    %v858 = vpop.f32.mrb[0].mxu0
    %v859 = vadd.f32 0.0, %v858
    %v860 = vpop.f32.mrb[0].mxu0
    %861 = vdwg.mxu0
    %862 = vmatprep.subr.mxu0 0.0
    %863 = vmatpush1.msra.mxu0 %v753
    %864 = vmatprep.subr.mxu0 0.0
    %865 = vmatpush1.msra.mxu0 %v754
    %866 = vmatprep.subr.mxu0 0.0
    %867 = vmatpush1.msra.mxu0 %v755
    %868 = vmatprep.subr.mxu0 0.0
    %869 = vmatpush1.msra.mxu0 %v756
    %870 = vmatprep.subr.mxu0 0.0
    %871 = vmatpush1.msra.mxu0 %v757
    %872 = vmatprep.subr.mxu0 0.0
    %873 = vmatpush1.msra.mxu0 %v758
    %874 = vmatprep.subr.mxu0 0.0
    %875 = vmatpush1.msra.mxu0 %v759
    %876 = vmatprep.subr.mxu0 0.0
    %877 = vmatpush1.msra.mxu0 %v760
    %878 = vmatprep.subr.mxu0 0.0
    %879 = vmatpush1.msra.mxu0 %v761
    %880 = vmatprep.subr.mxu0 0.0
    %881 = vmatpush1.msra.mxu0 %v762
    %882 = vmatprep.subr.mxu0 0.0
    %883 = vmatpush1.msra.mxu0 %v763
    %884 = vmatprep.subr.mxu0 0.0
    %885 = vmatpush1.msra.mxu0 %v764
    %886 = vmatprep.subr.mxu0 0.0
    %887 = vmatpush1.msra.mxu0 %v765
    %888 = vmatprep.subr.mxu0 0.0
    %889 = vmatpush1.msra.mxu0 %v766
    %890 = vmatprep.subr.mxu0 0.0
    %891 = vmatpush1.msra.mxu0 %v767
    %892 = vmatprep.subr.mxu0 0.0
    %893 = vmatpush1.msra.mxu0 %v768
    %894 = vmatprep.subr.mxu0 0.0
    %895 = vmatpush1.msra.mxu0 0.0
    %896 = vmatprep.subr.mxu0 0.0
    %897 = vmatpush1.msra.mxu0 0.0
    %898 = vmatprep.subr.mxu0 0.0
    %899 = vmatpush1.msra.mxu0 0.0
    %900 = vmatprep.subr.mxu0 0.0
    %901 = vmatpush1.msra.mxu0 0.0
    %902 = vmatprep.subr.mxu0 0.0
    %903 = vmatpush1.msra.mxu0 0.0
    %904 = vmatprep.subr.mxu0 0.0
    %905 = vmatpush1.msra.mxu0 0.0
    %906 = vmatprep.subr.mxu0 0.0
    %907 = vmatpush1.msra.mxu0 0.0
    %908 = vmatprep.subr.mxu0 0.0
    %909 = vmatpush1.msra.mxu0 0.0
    %910 = vmatprep.subr.mxu0 0.0
    %911 = vmatpush1.msra.mxu0 0.0
    %912 = vmatprep.subr.mxu0 0.0
    %913 = vmatpush1.msra.mxu0 0.0
    %914 = vmatprep.subr.mxu0 0.0
    %915 = vmatpush1.msra.mxu0 0.0
    %916 = vmatprep.subr.mxu0 0.0
    %917 = vmatpush1.msra.mxu0 0.0
    %918 = vmatprep.subr.mxu0 0.0
    %919 = vmatpush1.msra.mxu0 0.0
    %920 = vmatprep.subr.mxu0 0.0
    %921 = vmatpush1.msra.mxu0 0.0
    %922 = vmatprep.subr.mxu0 0.0
    %923 = vmatpush1.msra.mxu0 0.0
    %924 = vmatprep.subr.mxu0 0.0
    %925 = vmatpush1.msra.mxu0 0.0
    %926 = vmatprep.mubr.f32.mxu0 0.0
    %927 = vmatmul.mubr.f32.gmra.mrb[0].mxu0 %v751
    %v928 = vpop.f32.mrb[0].mxu0
    %v929 = vadd.f32 %v854, %v928
    %v930 = vpop.f32.mrb[0].mxu0
    %931 = vmatprep.mubr.f32.mxu0 0.0
    %932 = vmatmul.mubr.f32.gmra.mrb[0].mxu0 %v752
    %v933 = vpop.f32.mrb[0].mxu0
    %v934 = vadd.f32 %v859, %v933
    %v935 = vpop.f32.mrb[0].mxu0
    %936 = vdwg.mxu0
    %v937 = vadd.f32 %v929, %v486
    %v938 = vadd.f32 %v934, %v486
    %v939 = vmax.f32 %v937, 0.0
    %v940 = vmax.f32 %v938, 0.0
    %v941 = vld [vmem:[#allocation17] sm:$0xff]
    %v942 = vld [vmem:[#allocation17 + $0x8] sm:$0xff]
    %v943 = vld [vmem:[#allocation17 + $0x10] sm:$0xff]
    %v944 = vld [vmem:[#allocation17 + $0x18] sm:$0xff]
    %v945 = vld [vmem:[#allocation17 + $0x20] sm:$0xff]
    %v946 = vld [vmem:[#allocation17 + $0x28] sm:$0xff]
    %v947 = vld [vmem:[#allocation17 + $0x30] sm:$0xff]
    %v948 = vld [vmem:[#allocation17 + $0x38] sm:$0xff]
    %v949 = vld [vmem:[#allocation17 + $0x40] sm:$0xff]
    %v950 = vld [vmem:[#allocation17 + $0x48] sm:$0xff]
    %v951 = vld [vmem:[#allocation17 + $0x50] sm:$0xff]
    %v952 = vld [vmem:[#allocation17 + $0x58] sm:$0xff]
    %v953 = vld [vmem:[#allocation17 + $0x60] sm:$0xff]
    %v954 = vld [vmem:[#allocation17 + $0x68] sm:$0xff]
    %v955 = vld [vmem:[#allocation17 + $0x70] sm:$0xff]
    %v956 = vld [vmem:[#allocation17 + $0x78] sm:$0xff]
    %957 = vmatprep.subr.mxu0 0.0
    %958 = vmatpush1.msra.mxu0 %v941
    %959 = vmatprep.subr.mxu0 0.0
    %960 = vmatpush1.msra.mxu0 %v942
    %961 = vmatprep.subr.mxu0 0.0
    %962 = vmatpush1.msra.mxu0 %v943
    %963 = vmatprep.subr.mxu0 0.0
    %964 = vmatpush1.msra.mxu0 %v944
    %965 = vmatprep.subr.mxu0 0.0
    %966 = vmatpush1.msra.mxu0 %v945
    %967 = vmatprep.subr.mxu0 0.0
    %968 = vmatpush1.msra.mxu0 %v946
    %969 = vmatprep.subr.mxu0 0.0
    %970 = vmatpush1.msra.mxu0 %v947
    %971 = vmatprep.subr.mxu0 0.0
    %972 = vmatpush1.msra.mxu0 %v948
    %973 = vmatprep.subr.mxu0 0.0
    %974 = vmatpush1.msra.mxu0 %v949
    %975 = vmatprep.subr.mxu0 0.0
    %976 = vmatpush1.msra.mxu0 %v950
    %977 = vmatprep.subr.mxu0 0.0
    %978 = vmatpush1.msra.mxu0 %v951
    %979 = vmatprep.subr.mxu0 0.0
    %980 = vmatpush1.msra.mxu0 %v952
    %981 = vmatprep.subr.mxu0 0.0
    %982 = vmatpush1.msra.mxu0 %v953
    %983 = vmatprep.subr.mxu0 0.0
    %984 = vmatpush1.msra.mxu0 %v954
    %985 = vmatprep.subr.mxu0 0.0
    %986 = vmatpush1.msra.mxu0 %v955
    %987 = vmatprep.subr.mxu0 0.0
    %988 = vmatpush1.msra.mxu0 %v956
    %989 = vmatprep.subr.mxu0 0.0
    %990 = vmatpush1.msra.mxu0 0.0
    %991 = vmatprep.subr.mxu0 0.0
    %992 = vmatpush1.msra.mxu0 0.0
    %993 = vmatprep.subr.mxu0 0.0
    %994 = vmatpush1.msra.mxu0 0.0
    %995 = vmatprep.subr.mxu0 0.0
    %996 = vmatpush1.msra.mxu0 0.0
    %997 = vmatprep.subr.mxu0 0.0
    %998 = vmatpush1.msra.mxu0 0.0
    %999 = vmatprep.subr.mxu0 0.0
    %1000 = vmatpush1.msra.mxu0 0.0
    %1001 = vmatprep.subr.mxu0 0.0
    %1002 = vmatpush1.msra.mxu0 0.0
    %1003 = vmatprep.subr.mxu0 0.0
    %1004 = vmatpush1.msra.mxu0 0.0
    %1005 = vmatprep.subr.mxu0 0.0
    %1006 = vmatpush1.msra.mxu0 0.0
    %1007 = vmatprep.subr.mxu0 0.0
    %1008 = vmatpush1.msra.mxu0 0.0
    %1009 = vmatprep.subr.mxu0 0.0
    %1010 = vmatpush1.msra.mxu0 0.0
    %1011 = vmatprep.subr.mxu0 0.0
    %1012 = vmatpush1.msra.mxu0 0.0
    %1013 = vmatprep.subr.mxu0 0.0
    %1014 = vmatpush1.msra.mxu0 0.0
    %1015 = vmatprep.subr.mxu0 0.0
    %1016 = vmatpush1.msra.mxu0 0.0
    %1017 = vmatprep.subr.mxu0 0.0
    %1018 = vmatpush1.msra.mxu0 0.0
    %1019 = vmatprep.subr.mxu0 0.0
    %1020 = vmatpush1.msra.mxu0 0.0
    %1021 = vmatprep.mubr.f32.mxu0 0.0
    %1022 = vmatmul.mubr.f32.gmra.mrb[0].mxu0 %v939
    %v1023 = vpop.f32.mrb[0].mxu0
    %v1024 = vadd.f32 %v512, %v1023
    %v1025 = vpop.f32.mrb[0].mxu0
    %1026 = vmatprep.mubr.f32.mxu0 0.0
    %1027 = vmatmul.mubr.f32.gmra.mrb[0].mxu0 %v940
    %v1028 = vpop.f32.mrb[0].mxu0
    %v1029 = vadd.f32 %v512, %v1028
    %v1030 = vpop.f32.mrb[0].mxu0
    %1031 = vdwg.mxu0
    %v1032 = vxor.u32 %v1024, 2147483648
    %v1033 = vxor.u32 %v1029, 2147483648
    %v1034 = vmul.f32 %v1032, 1.442695
    %v1035 = vpow.pop %v1034
    %v1036 = vmul.f32 %v1033, 1.442695
    %v1037 = vpow.pop %v1036
    %v1038 = vadd.f32 %v1035, 1.0
    %v1039 = vadd.f32 %v1037, 1.0
    %v1040 = vrcp.pop %v1038
    %v1041 = vmul.f32 1.0, %v1040
    %v1042 = vrcp.pop %v1039
    %v1043 = vmul.f32 1.0, %v1042
    %v1044 = vsub.f32 %v1041, 0.5
    %v1045 = vsub.f32 %v1043, 0.5
    %v1046 = vxor.u32 %v1044, 2147483648
    %v1047 = vxor.u32 %v1045, 2147483648
    %v1048 = vmul.f32 %v1046, 1.442695
    %v1049 = vpow.pop %v1048
    %v1050 = vmul.f32 %v1047, 1.442695
    %v1051 = vpow.pop %v1050
    %v1052 = vadd.f32 %v1049, 1.0
    %v1053 = vadd.f32 %v1051, 1.0
    %v1054 = vrcp.pop %v1052
    %v1055 = vmul.f32 1.0, %v1054
    %v1056 = vrcp.pop %v1053
    %v1057 = vmul.f32 1.0, %v1056
    %1058 = vst [vmem:[%s17] sm:$0xff] %v1055
    %1059 = vst [vmem:[%s17 + $0x8] sm:$0xff] %v1057
    %v1060 = vld [vmem:[#allocation2] sm:$0xff]
    %v1061 = vld [vmem:[#allocation2 + $0x8] sm:$0xff]
    %v1062 = vld [vmem:[%s17] sm:$0xff]
    %v1063 = vld [vmem:[%s17 + $0x8] sm:$0xff]
    %v1064 = vmul.f32 %v1060, %v1062
    %v1065 = vmul.f32 %v1061, %v1063
    %1066 = vst [vmem:[#allocation2] sm:$0xff] %v1064
    %1067 = vst [vmem:[#allocation2 + $0x8] sm:$0xff] %v1065
    %1068 = vst [vmem:[#allocation4] sm:$0xff] 0.0
    loop: start=0, step=1, limit=12
    $region123: #{gnn_softmask_forward.1} parent=1 // loop_pre_header
      _
    $region124: #{gnn_softmask_forward.1} parent=1 // loop_header
      %s1070 = sphi 0, %s1074
      %p1071 = scmp.ge.s32.totalorder %s1070, 12
    $region125: #{gnn_softmask_forward.1} parent=1 // loop_header_branch
      %1073 = sbr.rel (%p1071) target = $region129
    $region126: #{gnn_softmask_forward.1} parent=1 // loop_body
      %s1075 = sld [smem:[#allocation9 + %s1070]]
      %s1076 = scalar_lea.vmem [#allocation4], %s1075
      %v1077 = vld [vmem:[%s1076] sm:$0x1]
      %s1078 = scalar_lea.vmem [#allocation2], %s1070
      %v1079 = vld [vmem:[%s1078] sm:$0x1]
      %v1080 = vadd.f32 %v1077, %v1079
      %1081 = vst [vmem:[%s1076] sm:$0x1] %v1080
    $region127: #{gnn_softmask_forward.1} parent=1 // loop_footer
      %s1074 = sadd.s32 1, %s1070
    $region128: #{gnn_softmask_forward.1} parent=1 // loop_footer_branch
      %1069 = sbr.rel target = $region124
    $region129: #{gnn_softmask_forward.1} parent=1 // loop_exit
      _
    %v1082 = vld [vmem:[#allocation21] sm:$0xff]
    %v1083 = vld [vmem:[#allocation4] sm:$0xff]
    %v1084 = vadd.f32 %v1082, %v1083
    %s1085 = scalar_lea.vmem [#allocation12], 128
    %v1086 = vld [vmem:[%s1085] sm:$0xff]
    %v1087 = vld [vmem:[%s1085 + $0x8] sm:$0xff]
    %v1088 = vld [vmem:[%s1085 + $0x10] sm:$0xff]
    %v1089 = vld [vmem:[%s1085 + $0x18] sm:$0xff]
    %v1090 = vld [vmem:[%s1085 + $0x20] sm:$0xff]
    %v1091 = vld [vmem:[%s1085 + $0x28] sm:$0xff]
    %v1092 = vld [vmem:[%s1085 + $0x30] sm:$0xff]
    %v1093 = vld [vmem:[%s1085 + $0x38] sm:$0xff]
    %v1094 = vld [vmem:[%s1085 + $0x40] sm:$0xff]
    %v1095 = vld [vmem:[%s1085 + $0x48] sm:$0xff]
    %v1096 = vld [vmem:[%s1085 + $0x50] sm:$0xff]
    %v1097 = vld [vmem:[%s1085 + $0x58] sm:$0xff]
    %v1098 = vld [vmem:[%s1085 + $0x60] sm:$0xff]
    %v1099 = vld [vmem:[%s1085 + $0x68] sm:$0xff]
    %v1100 = vld [vmem:[%s1085 + $0x70] sm:$0xff]
    %v1101 = vld [vmem:[%s1085 + $0x78] sm:$0xff]
    %v1102 = vld [vmem:[%s6 + $0x1] sm:$0x1]
    %v1103 = vlaneseq
    %v1104 = vshrl.u32 %v1103, 7
    %v1105 = vsub.s32 0, %v1104
    %v1106 = vrot.slane %v1102, %v1105
    %1107 = vmatprep.subr.mxu0 0.0
    %1108 = vmatpush1.msra.mxu0 %v1086
    %1109 = vmatprep.subr.mxu0 0.0
    %1110 = vmatpush1.msra.mxu0 %v1087
    %1111 = vmatprep.subr.mxu0 0.0
    %1112 = vmatpush1.msra.mxu0 %v1088
    %1113 = vmatprep.subr.mxu0 0.0
    %1114 = vmatpush1.msra.mxu0 %v1089
    %1115 = vmatprep.subr.mxu0 0.0
    %1116 = vmatpush1.msra.mxu0 %v1090
    %1117 = vmatprep.subr.mxu0 0.0
    %1118 = vmatpush1.msra.mxu0 %v1091
    %1119 = vmatprep.subr.mxu0 0.0
    %1120 = vmatpush1.msra.mxu0 %v1092
    %1121 = vmatprep.subr.mxu0 0.0
    %1122 = vmatpush1.msra.mxu0 %v1093
    %1123 = vmatprep.subr.mxu0 0.0
    %1124 = vmatpush1.msra.mxu0 %v1094
    %1125 = vmatprep.subr.mxu0 0.0
    %1126 = vmatpush1.msra.mxu0 %v1095
    %1127 = vmatprep.subr.mxu0 0.0
    %1128 = vmatpush1.msra.mxu0 %v1096
    %1129 = vmatprep.subr.mxu0 0.0
    %1130 = vmatpush1.msra.mxu0 %v1097
    %1131 = vmatprep.subr.mxu0 0.0
    %1132 = vmatpush1.msra.mxu0 %v1098
    %1133 = vmatprep.subr.mxu0 0.0
    %1134 = vmatpush1.msra.mxu0 %v1099
    %1135 = vmatprep.subr.mxu0 0.0
    %1136 = vmatpush1.msra.mxu0 %v1100
    %1137 = vmatprep.subr.mxu0 0.0
    %1138 = vmatpush1.msra.mxu0 %v1101
    %1139 = vmatprep.subr.mxu0 0.0
    %1140 = vmatpush1.msra.mxu0 0.0
    %1141 = vmatprep.subr.mxu0 0.0
    %1142 = vmatpush1.msra.mxu0 0.0
    %1143 = vmatprep.subr.mxu0 0.0
    %1144 = vmatpush1.msra.mxu0 0.0
    %1145 = vmatprep.subr.mxu0 0.0
    %1146 = vmatpush1.msra.mxu0 0.0
    %1147 = vmatprep.subr.mxu0 0.0
    %1148 = vmatpush1.msra.mxu0 0.0
    %1149 = vmatprep.subr.mxu0 0.0
    %1150 = vmatpush1.msra.mxu0 0.0
    %1151 = vmatprep.subr.mxu0 0.0
    %1152 = vmatpush1.msra.mxu0 0.0
    %1153 = vmatprep.subr.mxu0 0.0
    %1154 = vmatpush1.msra.mxu0 0.0
    %1155 = vmatprep.subr.mxu0 0.0
    %1156 = vmatpush1.msra.mxu0 0.0
    %1157 = vmatprep.subr.mxu0 0.0
    %1158 = vmatpush1.msra.mxu0 0.0
    %1159 = vmatprep.subr.mxu0 0.0
    %1160 = vmatpush1.msra.mxu0 0.0
    %1161 = vmatprep.subr.mxu0 0.0
    %1162 = vmatpush1.msra.mxu0 0.0
    %1163 = vmatprep.subr.mxu0 0.0
    %1164 = vmatpush1.msra.mxu0 0.0
    %1165 = vmatprep.subr.mxu0 0.0
    %1166 = vmatpush1.msra.mxu0 0.0
    %1167 = vmatprep.subr.mxu0 0.0
    %1168 = vmatpush1.msra.mxu0 0.0
    %1169 = vmatprep.subr.mxu0 0.0
    %1170 = vmatpush1.msra.mxu0 0.0
    %1171 = vmatprep.mubr.f32.mxu0 0.0
    %1172 = vmatmul.mubr.f32.gmra.mrb[0].mxu0 %v1084
    %v1173 = vpop.f32.mrb[0].mxu0
    %v1174 = vadd.f32 %v1106, %v1173
    %v1175 = vpop.f32.mrb[0].mxu0
    %1176 = vdwg.mxu0
    %v1177 = vmax.f32 %v1174, 0.0
    %1178 = vst [vmem:[#allocation21] sm:$0xff] %v1177
    loop: start=0, step=1, limit=12
    $region130: #{gnn_softmask_forward.1} parent=1 // loop_pre_header
      _
    $region131: #{gnn_softmask_forward.1} parent=1 // loop_header
      %s1180 = sphi 0, %s1184
      %p1181 = scmp.ge.s32.totalorder %s1180, 12
    $region132: #{gnn_softmask_forward.1} parent=1 // loop_header_branch
      %1183 = sbr.rel (%p1181) target = $region136
    $region133: #{gnn_softmask_forward.1} parent=1 // loop_body
      %s1185 = sld [smem:[#allocation5 + %s1180]]
      %s1186 = sld [smem:[#allocation9 + %s1180]]
      %s1187 = scalar_lea.vmem [#allocation21], %s1185
      %v1188 = vld [vmem:[%s1187] sm:$0x1]
      %s1189 = scalar_lea.vmem [#allocation2], %s1180
      %1190 = vst [vmem:[%s1189] sm:$0x1] %v1188
      %s1191 = scalar_lea.vmem [#allocation21], %s1186
      %v1192 = vld [vmem:[%s1191] sm:$0x1]
      %s1193 = scalar_lea.vmem [#allocation3], %s1180
      %1194 = vst [vmem:[%s1193] sm:$0x1] %v1192
    $region134: #{gnn_softmask_forward.1} parent=1 // loop_footer
      %s1184 = sadd.s32 1, %s1180
    $region135: #{gnn_softmask_forward.1} parent=1 // loop_footer_branch
      %1179 = sbr.rel target = $region131
    $region136: #{gnn_softmask_forward.1} parent=1 // loop_exit
      _
    %v1195 = vld [vmem:[#allocation2] sm:$0xff]
    %v1196 = vld [vmem:[#allocation2 + $0x8] sm:$0xff]
    %v1197 = vld [vmem:[#allocation14] sm:$0xff]
    %v1198 = vld [vmem:[#allocation14 + $0x8] sm:$0xff]
    %v1199 = vld [vmem:[#allocation14 + $0x10] sm:$0xff]
    %v1200 = vld [vmem:[#allocation14 + $0x18] sm:$0xff]
    %v1201 = vld [vmem:[#allocation14 + $0x20] sm:$0xff]
    %v1202 = vld [vmem:[#allocation14 + $0x28] sm:$0xff]
    %v1203 = vld [vmem:[#allocation14 + $0x30] sm:$0xff]
    %v1204 = vld [vmem:[#allocation14 + $0x38] sm:$0xff]
    %v1205 = vld [vmem:[#allocation14 + $0x40] sm:$0xff]
    %v1206 = vld [vmem:[#allocation14 + $0x48] sm:$0xff]
    %v1207 = vld [vmem:[#allocation14 + $0x50] sm:$0xff]
    %v1208 = vld [vmem:[#allocation14 + $0x58] sm:$0xff]
    %v1209 = vld [vmem:[#allocation14 + $0x60] sm:$0xff]
    %v1210 = vld [vmem:[#allocation14 + $0x68] sm:$0xff]
    %v1211 = vld [vmem:[#allocation14 + $0x70] sm:$0xff]
    %v1212 = vld [vmem:[#allocation14 + $0x78] sm:$0xff]
    %v1213 = vld [vmem:[#allocation3] sm:$0xff]
    %v1214 = vld [vmem:[#allocation3 + $0x8] sm:$0xff]
    %v1215 = vld [vmem:[#allocation15] sm:$0xff]
    %v1216 = vld [vmem:[#allocation15 + $0x8] sm:$0xff]
    %v1217 = vld [vmem:[#allocation15 + $0x10] sm:$0xff]
    %v1218 = vld [vmem:[#allocation15 + $0x18] sm:$0xff]
    %v1219 = vld [vmem:[#allocation15 + $0x20] sm:$0xff]
    %v1220 = vld [vmem:[#allocation15 + $0x28] sm:$0xff]
    %v1221 = vld [vmem:[#allocation15 + $0x30] sm:$0xff]
    %v1222 = vld [vmem:[#allocation15 + $0x38] sm:$0xff]
    %v1223 = vld [vmem:[#allocation15 + $0x40] sm:$0xff]
    %v1224 = vld [vmem:[#allocation15 + $0x48] sm:$0xff]
    %v1225 = vld [vmem:[#allocation15 + $0x50] sm:$0xff]
    %v1226 = vld [vmem:[#allocation15 + $0x58] sm:$0xff]
    %v1227 = vld [vmem:[#allocation15 + $0x60] sm:$0xff]
    %v1228 = vld [vmem:[#allocation15 + $0x68] sm:$0xff]
    %v1229 = vld [vmem:[#allocation15 + $0x70] sm:$0xff]
    %v1230 = vld [vmem:[#allocation15 + $0x78] sm:$0xff]
    %1231 = vmatprep.subr.mxu0 0.0
    %1232 = vmatpush1.msra.mxu0 %v1215
    %1233 = vmatprep.subr.mxu0 0.0
    %1234 = vmatpush1.msra.mxu0 %v1216
    %1235 = vmatprep.subr.mxu0 0.0
    %1236 = vmatpush1.msra.mxu0 %v1217
    %1237 = vmatprep.subr.mxu0 0.0
    %1238 = vmatpush1.msra.mxu0 %v1218
    %1239 = vmatprep.subr.mxu0 0.0
    %1240 = vmatpush1.msra.mxu0 %v1219
    %1241 = vmatprep.subr.mxu0 0.0
    %1242 = vmatpush1.msra.mxu0 %v1220
    %1243 = vmatprep.subr.mxu0 0.0
    %1244 = vmatpush1.msra.mxu0 %v1221
    %1245 = vmatprep.subr.mxu0 0.0
    %1246 = vmatpush1.msra.mxu0 %v1222
    %1247 = vmatprep.subr.mxu0 0.0
    %1248 = vmatpush1.msra.mxu0 %v1223
    %1249 = vmatprep.subr.mxu0 0.0
    %1250 = vmatpush1.msra.mxu0 %v1224
    %1251 = vmatprep.subr.mxu0 0.0
    %1252 = vmatpush1.msra.mxu0 %v1225
    %1253 = vmatprep.subr.mxu0 0.0
    %1254 = vmatpush1.msra.mxu0 %v1226
    %1255 = vmatprep.subr.mxu0 0.0
    %1256 = vmatpush1.msra.mxu0 %v1227
    %1257 = vmatprep.subr.mxu0 0.0
    %1258 = vmatpush1.msra.mxu0 %v1228
    %1259 = vmatprep.subr.mxu0 0.0
    %1260 = vmatpush1.msra.mxu0 %v1229
    %1261 = vmatprep.subr.mxu0 0.0
    %1262 = vmatpush1.msra.mxu0 %v1230
    %1263 = vmatprep.subr.mxu0 0.0
    %1264 = vmatpush1.msra.mxu0 0.0
    %1265 = vmatprep.subr.mxu0 0.0
    %1266 = vmatpush1.msra.mxu0 0.0
    %1267 = vmatprep.subr.mxu0 0.0
    %1268 = vmatpush1.msra.mxu0 0.0
    %1269 = vmatprep.subr.mxu0 0.0
    %1270 = vmatpush1.msra.mxu0 0.0
    %1271 = vmatprep.subr.mxu0 0.0
    %1272 = vmatpush1.msra.mxu0 0.0
    %1273 = vmatprep.subr.mxu0 0.0
    %1274 = vmatpush1.msra.mxu0 0.0
    %1275 = vmatprep.subr.mxu0 0.0
    %1276 = vmatpush1.msra.mxu0 0.0
    %1277 = vmatprep.subr.mxu0 0.0
    %1278 = vmatpush1.msra.mxu0 0.0
    %1279 = vmatprep.subr.mxu0 0.0
    %1280 = vmatpush1.msra.mxu0 0.0
    %1281 = vmatprep.subr.mxu0 0.0
    %1282 = vmatpush1.msra.mxu0 0.0
    %1283 = vmatprep.subr.mxu0 0.0
    %1284 = vmatpush1.msra.mxu0 0.0
    %1285 = vmatprep.subr.mxu0 0.0
    %1286 = vmatpush1.msra.mxu0 0.0
    %1287 = vmatprep.subr.mxu0 0.0
    %1288 = vmatpush1.msra.mxu0 0.0
    %1289 = vmatprep.subr.mxu0 0.0
    %1290 = vmatpush1.msra.mxu0 0.0
    %1291 = vmatprep.subr.mxu0 0.0
    %1292 = vmatpush1.msra.mxu0 0.0
    %1293 = vmatprep.subr.mxu0 0.0
    %1294 = vmatpush1.msra.mxu0 0.0
    %1295 = vmatprep.mubr.f32.mxu0 0.0
    %1296 = vmatmul.mubr.f32.gmra.mrb[0].mxu0 %v1213
    %v1297 = vpop.f32.mrb[0].mxu0
    %v1298 = vadd.f32 0.0, %v1297
    %v1299 = vpop.f32.mrb[0].mxu0
    %1300 = vmatprep.mubr.f32.mxu0 0.0
    %1301 = vmatmul.mubr.f32.gmra.mrb[0].mxu0 %v1214
    %v1302 = vpop.f32.mrb[0].mxu0
    %v1303 = vadd.f32 0.0, %v1302
    %v1304 = vpop.f32.mrb[0].mxu0
    %1305 = vdwg.mxu0
    %1306 = vmatprep.subr.mxu0 0.0
    %1307 = vmatpush1.msra.mxu0 %v1197
    %1308 = vmatprep.subr.mxu0 0.0
    %1309 = vmatpush1.msra.mxu0 %v1198
    %1310 = vmatprep.subr.mxu0 0.0
    %1311 = vmatpush1.msra.mxu0 %v1199
    %1312 = vmatprep.subr.mxu0 0.0
    %1313 = vmatpush1.msra.mxu0 %v1200
    %1314 = vmatprep.subr.mxu0 0.0
    %1315 = vmatpush1.msra.mxu0 %v1201
    %1316 = vmatprep.subr.mxu0 0.0
    %1317 = vmatpush1.msra.mxu0 %v1202
    %1318 = vmatprep.subr.mxu0 0.0
    %1319 = vmatpush1.msra.mxu0 %v1203
    %1320 = vmatprep.subr.mxu0 0.0
    %1321 = vmatpush1.msra.mxu0 %v1204
    %1322 = vmatprep.subr.mxu0 0.0
    %1323 = vmatpush1.msra.mxu0 %v1205
    %1324 = vmatprep.subr.mxu0 0.0
    %1325 = vmatpush1.msra.mxu0 %v1206
    %1326 = vmatprep.subr.mxu0 0.0
    %1327 = vmatpush1.msra.mxu0 %v1207
    %1328 = vmatprep.subr.mxu0 0.0
    %1329 = vmatpush1.msra.mxu0 %v1208
    %1330 = vmatprep.subr.mxu0 0.0
    %1331 = vmatpush1.msra.mxu0 %v1209
    %1332 = vmatprep.subr.mxu0 0.0
    %1333 = vmatpush1.msra.mxu0 %v1210
    %1334 = vmatprep.subr.mxu0 0.0
    %1335 = vmatpush1.msra.mxu0 %v1211
    %1336 = vmatprep.subr.mxu0 0.0
    %1337 = vmatpush1.msra.mxu0 %v1212
    %1338 = vmatprep.subr.mxu0 0.0
    %1339 = vmatpush1.msra.mxu0 0.0
    %1340 = vmatprep.subr.mxu0 0.0
    %1341 = vmatpush1.msra.mxu0 0.0
    %1342 = vmatprep.subr.mxu0 0.0
    %1343 = vmatpush1.msra.mxu0 0.0
    %1344 = vmatprep.subr.mxu0 0.0
    %1345 = vmatpush1.msra.mxu0 0.0
    %1346 = vmatprep.subr.mxu0 0.0
    %1347 = vmatpush1.msra.mxu0 0.0
    %1348 = vmatprep.subr.mxu0 0.0
    %1349 = vmatpush1.msra.mxu0 0.0
    %1350 = vmatprep.subr.mxu0 0.0
    %1351 = vmatpush1.msra.mxu0 0.0
    %1352 = vmatprep.subr.mxu0 0.0
    %1353 = vmatpush1.msra.mxu0 0.0
    %1354 = vmatprep.subr.mxu0 0.0
    %1355 = vmatpush1.msra.mxu0 0.0
    %1356 = vmatprep.subr.mxu0 0.0
    %1357 = vmatpush1.msra.mxu0 0.0
    %1358 = vmatprep.subr.mxu0 0.0
    %1359 = vmatpush1.msra.mxu0 0.0
    %1360 = vmatprep.subr.mxu0 0.0
    %1361 = vmatpush1.msra.mxu0 0.0
    %1362 = vmatprep.subr.mxu0 0.0
    %1363 = vmatpush1.msra.mxu0 0.0
    %1364 = vmatprep.subr.mxu0 0.0
    %1365 = vmatpush1.msra.mxu0 0.0
    %1366 = vmatprep.subr.mxu0 0.0
    %1367 = vmatpush1.msra.mxu0 0.0
    %1368 = vmatprep.subr.mxu0 0.0
    %1369 = vmatpush1.msra.mxu0 0.0
    %1370 = vmatprep.mubr.f32.mxu0 0.0
    %1371 = vmatmul.mubr.f32.gmra.mrb[0].mxu0 %v1195
    %v1372 = vpop.f32.mrb[0].mxu0
    %v1373 = vadd.f32 %v1298, %v1372
    %v1374 = vpop.f32.mrb[0].mxu0
    %1375 = vmatprep.mubr.f32.mxu0 0.0
    %1376 = vmatmul.mubr.f32.gmra.mrb[0].mxu0 %v1196
    %v1377 = vpop.f32.mrb[0].mxu0
    %v1378 = vadd.f32 %v1303, %v1377
    %v1379 = vpop.f32.mrb[0].mxu0
    %1380 = vdwg.mxu0
    %v1381 = vadd.f32 %v1373, %v486
    %v1382 = vadd.f32 %v1378, %v486
    %v1383 = vmax.f32 %v1381, 0.0
    %v1384 = vmax.f32 %v1382, 0.0
    %v1385 = vld [vmem:[#allocation17] sm:$0xff]
    %v1386 = vld [vmem:[#allocation17 + $0x8] sm:$0xff]
    %v1387 = vld [vmem:[#allocation17 + $0x10] sm:$0xff]
    %v1388 = vld [vmem:[#allocation17 + $0x18] sm:$0xff]
    %v1389 = vld [vmem:[#allocation17 + $0x20] sm:$0xff]
    %v1390 = vld [vmem:[#allocation17 + $0x28] sm:$0xff]
    %v1391 = vld [vmem:[#allocation17 + $0x30] sm:$0xff]
    %v1392 = vld [vmem:[#allocation17 + $0x38] sm:$0xff]
    %v1393 = vld [vmem:[#allocation17 + $0x40] sm:$0xff]
    %v1394 = vld [vmem:[#allocation17 + $0x48] sm:$0xff]
    %v1395 = vld [vmem:[#allocation17 + $0x50] sm:$0xff]
    %v1396 = vld [vmem:[#allocation17 + $0x58] sm:$0xff]
    %v1397 = vld [vmem:[#allocation17 + $0x60] sm:$0xff]
    %v1398 = vld [vmem:[#allocation17 + $0x68] sm:$0xff]
    %v1399 = vld [vmem:[#allocation17 + $0x70] sm:$0xff]
    %v1400 = vld [vmem:[#allocation17 + $0x78] sm:$0xff]
    %1401 = vmatprep.subr.mxu0 0.0
    %1402 = vmatpush1.msra.mxu0 %v1385
    %1403 = vmatprep.subr.mxu0 0.0
    %1404 = vmatpush1.msra.mxu0 %v1386
    %1405 = vmatprep.subr.mxu0 0.0
    %1406 = vmatpush1.msra.mxu0 %v1387
    %1407 = vmatprep.subr.mxu0 0.0
    %1408 = vmatpush1.msra.mxu0 %v1388
    %1409 = vmatprep.subr.mxu0 0.0
    %1410 = vmatpush1.msra.mxu0 %v1389
    %1411 = vmatprep.subr.mxu0 0.0
    %1412 = vmatpush1.msra.mxu0 %v1390
    %1413 = vmatprep.subr.mxu0 0.0
    %1414 = vmatpush1.msra.mxu0 %v1391
    %1415 = vmatprep.subr.mxu0 0.0
    %1416 = vmatpush1.msra.mxu0 %v1392
    %1417 = vmatprep.subr.mxu0 0.0
    %1418 = vmatpush1.msra.mxu0 %v1393
    %1419 = vmatprep.subr.mxu0 0.0
    %1420 = vmatpush1.msra.mxu0 %v1394
    %1421 = vmatprep.subr.mxu0 0.0
    %1422 = vmatpush1.msra.mxu0 %v1395
    %1423 = vmatprep.subr.mxu0 0.0
    %1424 = vmatpush1.msra.mxu0 %v1396
    %1425 = vmatprep.subr.mxu0 0.0
    %1426 = vmatpush1.msra.mxu0 %v1397
    %1427 = vmatprep.subr.mxu0 0.0
    %1428 = vmatpush1.msra.mxu0 %v1398
    %1429 = vmatprep.subr.mxu0 0.0
    %1430 = vmatpush1.msra.mxu0 %v1399
    %1431 = vmatprep.subr.mxu0 0.0
    %1432 = vmatpush1.msra.mxu0 %v1400
    %1433 = vmatprep.subr.mxu0 0.0
    %1434 = vmatpush1.msra.mxu0 0.0
    %1435 = vmatprep.subr.mxu0 0.0
    %1436 = vmatpush1.msra.mxu0 0.0
    %1437 = vmatprep.subr.mxu0 0.0
    %1438 = vmatpush1.msra.mxu0 0.0
    %1439 = vmatprep.subr.mxu0 0.0
    %1440 = vmatpush1.msra.mxu0 0.0
    %1441 = vmatprep.subr.mxu0 0.0
    %1442 = vmatpush1.msra.mxu0 0.0
    %1443 = vmatprep.subr.mxu0 0.0
    %1444 = vmatpush1.msra.mxu0 0.0
    %1445 = vmatprep.subr.mxu0 0.0
    %1446 = vmatpush1.msra.mxu0 0.0
    %1447 = vmatprep.subr.mxu0 0.0
    %1448 = vmatpush1.msra.mxu0 0.0
    %1449 = vmatprep.subr.mxu0 0.0
    %1450 = vmatpush1.msra.mxu0 0.0
    %1451 = vmatprep.subr.mxu0 0.0
    %1452 = vmatpush1.msra.mxu0 0.0
    %1453 = vmatprep.subr.mxu0 0.0
    %1454 = vmatpush1.msra.mxu0 0.0
    %1455 = vmatprep.subr.mxu0 0.0
    %1456 = vmatpush1.msra.mxu0 0.0
    %1457 = vmatprep.subr.mxu0 0.0
    %1458 = vmatpush1.msra.mxu0 0.0
    %1459 = vmatprep.subr.mxu0 0.0
    %1460 = vmatpush1.msra.mxu0 0.0
    %1461 = vmatprep.subr.mxu0 0.0
    %1462 = vmatpush1.msra.mxu0 0.0
    %1463 = vmatprep.subr.mxu0 0.0
    %1464 = vmatpush1.msra.mxu0 0.0
    %1465 = vmatprep.mubr.f32.mxu0 0.0
    %1466 = vmatmul.mubr.f32.gmra.mrb[0].mxu0 %v1383
    %v1467 = vpop.f32.mrb[0].mxu0
    %v1468 = vadd.f32 %v512, %v1467
    %v1469 = vpop.f32.mrb[0].mxu0
    %1470 = vmatprep.mubr.f32.mxu0 0.0
    %1471 = vmatmul.mubr.f32.gmra.mrb[0].mxu0 %v1384
    %v1472 = vpop.f32.mrb[0].mxu0
    %v1473 = vadd.f32 %v512, %v1472
    %v1474 = vpop.f32.mrb[0].mxu0
    %1475 = vdwg.mxu0
    %v1476 = vxor.u32 %v1468, 2147483648
    %v1477 = vxor.u32 %v1473, 2147483648
    %v1478 = vmul.f32 %v1476, 1.442695
    %v1479 = vpow.pop %v1478
    %v1480 = vmul.f32 %v1477, 1.442695
    %v1481 = vpow.pop %v1480
    %v1482 = vadd.f32 %v1479, 1.0
    %v1483 = vadd.f32 %v1481, 1.0
    %v1484 = vrcp.pop %v1482
    %v1485 = vmul.f32 1.0, %v1484
    %v1486 = vrcp.pop %v1483
    %v1487 = vmul.f32 1.0, %v1486
    %v1488 = vsub.f32 %v1485, 0.5
    %v1489 = vsub.f32 %v1487, 0.5
    %v1490 = vxor.u32 %v1488, 2147483648
    %v1491 = vxor.u32 %v1489, 2147483648
    %v1492 = vmul.f32 %v1490, 1.442695
    %v1493 = vpow.pop %v1492
    %v1494 = vmul.f32 %v1491, 1.442695
    %v1495 = vpow.pop %v1494
    %v1496 = vadd.f32 %v1493, 1.0
    %v1497 = vadd.f32 %v1495, 1.0
    %v1498 = vrcp.pop %v1496
    %v1499 = vmul.f32 1.0, %v1498
    %v1500 = vrcp.pop %v1497
    %v1501 = vmul.f32 1.0, %v1500
    %1502 = vst [vmem:[%s17] sm:$0xff] %v1499
    %1503 = vst [vmem:[%s17 + $0x8] sm:$0xff] %v1501
    %v1504 = vld [vmem:[#allocation2] sm:$0xff]
    %v1505 = vld [vmem:[#allocation2 + $0x8] sm:$0xff]
    %v1506 = vld [vmem:[%s17] sm:$0xff]
    %v1507 = vld [vmem:[%s17 + $0x8] sm:$0xff]
    %v1508 = vmul.f32 %v1504, %v1506
    %v1509 = vmul.f32 %v1505, %v1507
    %1510 = vst [vmem:[#allocation2] sm:$0xff] %v1508
    %1511 = vst [vmem:[#allocation2 + $0x8] sm:$0xff] %v1509
    %1512 = vst [vmem:[#allocation4] sm:$0xff] 0.0
    loop: start=0, step=1, limit=12
    $region137: #{gnn_softmask_forward.1} parent=1 // loop_pre_header
      _
    $region138: #{gnn_softmask_forward.1} parent=1 // loop_header
      %s1514 = sphi 0, %s1518
      %p1515 = scmp.ge.s32.totalorder %s1514, 12
    $region139: #{gnn_softmask_forward.1} parent=1 // loop_header_branch
      %1517 = sbr.rel (%p1515) target = $region143
    $region140: #{gnn_softmask_forward.1} parent=1 // loop_body
      %s1519 = sld [smem:[#allocation9 + %s1514]]
      %s1520 = scalar_lea.vmem [#allocation4], %s1519
      %v1521 = vld [vmem:[%s1520] sm:$0x1]
      %s1522 = scalar_lea.vmem [#allocation2], %s1514
      %v1523 = vld [vmem:[%s1522] sm:$0x1]
      %v1524 = vadd.f32 %v1521, %v1523
      %1525 = vst [vmem:[%s1520] sm:$0x1] %v1524
    $region141: #{gnn_softmask_forward.1} parent=1 // loop_footer
      %s1518 = sadd.s32 1, %s1514
    $region142: #{gnn_softmask_forward.1} parent=1 // loop_footer_branch
      %1513 = sbr.rel target = $region138
    $region143: #{gnn_softmask_forward.1} parent=1 // loop_exit
      _
    %v1526 = vld [vmem:[#allocation21] sm:$0xff]
    %v1527 = vld [vmem:[#allocation4] sm:$0xff]
    %v1528 = vadd.f32 %v1526, %v1527
    %s1529 = scalar_lea.vmem [#allocation12], 256
    %v1530 = vld [vmem:[%s1529] sm:$0xff]
    %v1531 = vld [vmem:[%s1529 + $0x8] sm:$0xff]
    %v1532 = vld [vmem:[%s1529 + $0x10] sm:$0xff]
    %v1533 = vld [vmem:[%s1529 + $0x18] sm:$0xff]
    %v1534 = vld [vmem:[%s1529 + $0x20] sm:$0xff]
    %v1535 = vld [vmem:[%s1529 + $0x28] sm:$0xff]
    %v1536 = vld [vmem:[%s1529 + $0x30] sm:$0xff]
    %v1537 = vld [vmem:[%s1529 + $0x38] sm:$0xff]
    %v1538 = vld [vmem:[%s1529 + $0x40] sm:$0xff]
    %v1539 = vld [vmem:[%s1529 + $0x48] sm:$0xff]
    %v1540 = vld [vmem:[%s1529 + $0x50] sm:$0xff]
    %v1541 = vld [vmem:[%s1529 + $0x58] sm:$0xff]
    %v1542 = vld [vmem:[%s1529 + $0x60] sm:$0xff]
    %v1543 = vld [vmem:[%s1529 + $0x68] sm:$0xff]
    %v1544 = vld [vmem:[%s1529 + $0x70] sm:$0xff]
    %v1545 = vld [vmem:[%s1529 + $0x78] sm:$0xff]
    %v1546 = vld [vmem:[%s6 + $0x2] sm:$0x1]
    %v1547 = vlaneseq
    %v1548 = vshrl.u32 %v1547, 7
    %v1549 = vsub.s32 0, %v1548
    %v1550 = vrot.slane %v1546, %v1549
    %1551 = vmatprep.subr.mxu0 0.0
    %1552 = vmatpush1.msra.mxu0 %v1530
    %1553 = vmatprep.subr.mxu0 0.0
    %1554 = vmatpush1.msra.mxu0 %v1531
    %1555 = vmatprep.subr.mxu0 0.0
    %1556 = vmatpush1.msra.mxu0 %v1532
    %1557 = vmatprep.subr.mxu0 0.0
    %1558 = vmatpush1.msra.mxu0 %v1533
    %1559 = vmatprep.subr.mxu0 0.0
    %1560 = vmatpush1.msra.mxu0 %v1534
    %1561 = vmatprep.subr.mxu0 0.0
    %1562 = vmatpush1.msra.mxu0 %v1535
    %1563 = vmatprep.subr.mxu0 0.0
    %1564 = vmatpush1.msra.mxu0 %v1536
    %1565 = vmatprep.subr.mxu0 0.0
    %1566 = vmatpush1.msra.mxu0 %v1537
    %1567 = vmatprep.subr.mxu0 0.0
    %1568 = vmatpush1.msra.mxu0 %v1538
    %1569 = vmatprep.subr.mxu0 0.0
    %1570 = vmatpush1.msra.mxu0 %v1539
    %1571 = vmatprep.subr.mxu0 0.0
    %1572 = vmatpush1.msra.mxu0 %v1540
    %1573 = vmatprep.subr.mxu0 0.0
    %1574 = vmatpush1.msra.mxu0 %v1541
    %1575 = vmatprep.subr.mxu0 0.0
    %1576 = vmatpush1.msra.mxu0 %v1542
    %1577 = vmatprep.subr.mxu0 0.0
    %1578 = vmatpush1.msra.mxu0 %v1543
    %1579 = vmatprep.subr.mxu0 0.0
    %1580 = vmatpush1.msra.mxu0 %v1544
    %1581 = vmatprep.subr.mxu0 0.0
    %1582 = vmatpush1.msra.mxu0 %v1545
    %1583 = vmatprep.subr.mxu0 0.0
    %1584 = vmatpush1.msra.mxu0 0.0
    %1585 = vmatprep.subr.mxu0 0.0
    %1586 = vmatpush1.msra.mxu0 0.0
    %1587 = vmatprep.subr.mxu0 0.0
    %1588 = vmatpush1.msra.mxu0 0.0
    %1589 = vmatprep.subr.mxu0 0.0
    %1590 = vmatpush1.msra.mxu0 0.0
    %1591 = vmatprep.subr.mxu0 0.0
    %1592 = vmatpush1.msra.mxu0 0.0
    %1593 = vmatprep.subr.mxu0 0.0
    %1594 = vmatpush1.msra.mxu0 0.0
    %1595 = vmatprep.subr.mxu0 0.0
    %1596 = vmatpush1.msra.mxu0 0.0
    %1597 = vmatprep.subr.mxu0 0.0
    %1598 = vmatpush1.msra.mxu0 0.0
    %1599 = vmatprep.subr.mxu0 0.0
    %1600 = vmatpush1.msra.mxu0 0.0
    %1601 = vmatprep.subr.mxu0 0.0
    %1602 = vmatpush1.msra.mxu0 0.0
    %1603 = vmatprep.subr.mxu0 0.0
    %1604 = vmatpush1.msra.mxu0 0.0
    %1605 = vmatprep.subr.mxu0 0.0
    %1606 = vmatpush1.msra.mxu0 0.0
    %1607 = vmatprep.subr.mxu0 0.0
    %1608 = vmatpush1.msra.mxu0 0.0
    %1609 = vmatprep.subr.mxu0 0.0
    %1610 = vmatpush1.msra.mxu0 0.0
    %1611 = vmatprep.subr.mxu0 0.0
    %1612 = vmatpush1.msra.mxu0 0.0
    %1613 = vmatprep.subr.mxu0 0.0
    %1614 = vmatpush1.msra.mxu0 0.0
    %1615 = vmatprep.mubr.f32.mxu0 0.0
    %1616 = vmatmul.mubr.f32.gmra.mrb[0].mxu0 %v1528
    %v1617 = vpop.f32.mrb[0].mxu0
    %v1618 = vadd.f32 %v1550, %v1617
    %v1619 = vpop.f32.mrb[0].mxu0
    %1620 = vdwg.mxu0
    %v1621 = vmax.f32 %v1618, 0.0
    %1622 = vst [vmem:[#allocation21] sm:$0xff] %v1621
    %v1623 = vld [vmem:[#allocation21] sm:$0x1]
    %v1624 = vld [vmem:[#allocation18] sm:$0xff]
    %v1625 = vld [vmem:[#allocation18 + $0x8] sm:$0xff]
    %v1626 = vld [vmem:[#allocation18 + $0x10] sm:$0xff]
    %v1627 = vld [vmem:[#allocation18 + $0x18] sm:$0xff]
    %v1628 = vld [vmem:[#allocation18 + $0x20] sm:$0xff]
    %v1629 = vld [vmem:[#allocation18 + $0x28] sm:$0xff]
    %v1630 = vld [vmem:[#allocation18 + $0x30] sm:$0xff]
    %v1631 = vld [vmem:[#allocation18 + $0x38] sm:$0xff]
    %v1632 = vld [vmem:[#allocation18 + $0x40] sm:$0xff]
    %v1633 = vld [vmem:[#allocation18 + $0x48] sm:$0xff]
    %v1634 = vld [vmem:[#allocation18 + $0x50] sm:$0xff]
    %v1635 = vld [vmem:[#allocation18 + $0x58] sm:$0xff]
    %v1636 = vld [vmem:[#allocation18 + $0x60] sm:$0xff]
    %v1637 = vld [vmem:[#allocation18 + $0x68] sm:$0xff]
    %v1638 = vld [vmem:[#allocation18 + $0x70] sm:$0xff]
    %v1639 = vld [vmem:[#allocation18 + $0x78] sm:$0xff]
    %v1640 = vld [vmem:[%s13] sm:$0x1]
    %1641 = vmatprep.subr.mxu0 0.0
    %1642 = vmatpush1.msra.mxu0 %v1624
    %1643 = vmatprep.subr.mxu0 0.0
    %1644 = vmatpush1.msra.mxu0 %v1625
    %1645 = vmatprep.subr.mxu0 0.0
    %1646 = vmatpush1.msra.mxu0 %v1626
    %1647 = vmatprep.subr.mxu0 0.0
    %1648 = vmatpush1.msra.mxu0 %v1627
    %1649 = vmatprep.subr.mxu0 0.0
    %1650 = vmatpush1.msra.mxu0 %v1628
    %1651 = vmatprep.subr.mxu0 0.0
    %1652 = vmatpush1.msra.mxu0 %v1629
    %1653 = vmatprep.subr.mxu0 0.0
    %1654 = vmatpush1.msra.mxu0 %v1630
    %1655 = vmatprep.subr.mxu0 0.0
    %1656 = vmatpush1.msra.mxu0 %v1631
    %1657 = vmatprep.subr.mxu0 0.0
    %1658 = vmatpush1.msra.mxu0 %v1632
    %1659 = vmatprep.subr.mxu0 0.0
    %1660 = vmatpush1.msra.mxu0 %v1633
    %1661 = vmatprep.subr.mxu0 0.0
    %1662 = vmatpush1.msra.mxu0 %v1634
    %1663 = vmatprep.subr.mxu0 0.0
    %1664 = vmatpush1.msra.mxu0 %v1635
    %1665 = vmatprep.subr.mxu0 0.0
    %1666 = vmatpush1.msra.mxu0 %v1636
    %1667 = vmatprep.subr.mxu0 0.0
    %1668 = vmatpush1.msra.mxu0 %v1637
    %1669 = vmatprep.subr.mxu0 0.0
    %1670 = vmatpush1.msra.mxu0 %v1638
    %1671 = vmatprep.subr.mxu0 0.0
    %1672 = vmatpush1.msra.mxu0 %v1639
    %1673 = vmatprep.subr.mxu0 0.0
    %1674 = vmatpush1.msra.mxu0 0.0
    %1675 = vmatprep.subr.mxu0 0.0
    %1676 = vmatpush1.msra.mxu0 0.0
    %1677 = vmatprep.subr.mxu0 0.0
    %1678 = vmatpush1.msra.mxu0 0.0
    %1679 = vmatprep.subr.mxu0 0.0
    %1680 = vmatpush1.msra.mxu0 0.0
    %1681 = vmatprep.subr.mxu0 0.0
    %1682 = vmatpush1.msra.mxu0 0.0
    %1683 = vmatprep.subr.mxu0 0.0
    %1684 = vmatpush1.msra.mxu0 0.0
    %1685 = vmatprep.subr.mxu0 0.0
    %1686 = vmatpush1.msra.mxu0 0.0
    %1687 = vmatprep.subr.mxu0 0.0
    %1688 = vmatpush1.msra.mxu0 0.0
    %1689 = vmatprep.subr.mxu0 0.0
    %1690 = vmatpush1.msra.mxu0 0.0
    %1691 = vmatprep.subr.mxu0 0.0
    %1692 = vmatpush1.msra.mxu0 0.0
    %1693 = vmatprep.subr.mxu0 0.0
    %1694 = vmatpush1.msra.mxu0 0.0
    %1695 = vmatprep.subr.mxu0 0.0
    %1696 = vmatpush1.msra.mxu0 0.0
    %1697 = vmatprep.subr.mxu0 0.0
    %1698 = vmatpush1.msra.mxu0 0.0
    %1699 = vmatprep.subr.mxu0 0.0
    %1700 = vmatpush1.msra.mxu0 0.0
    %1701 = vmatprep.subr.mxu0 0.0
    %1702 = vmatpush1.msra.mxu0 0.0
    %1703 = vmatprep.subr.mxu0 0.0
    %1704 = vmatpush1.msra.mxu0 0.0
    %1705 = vmatprep.mubr.f32.mxu0 0.0
    %1706 = vmatmul.mubr.f32.gmra.mrb[0].mxu0 %v1623
    %v1707 = vpop.f32.mrb[0].mxu0
    %v1708 = vadd.f32 %v1640, %v1707
    %v1709 = vpop.f32.mrb[0].mxu0
    %1710 = vdwg.mxu0
    %v1711 = vmax.f32 %v1708, 0.0
    %v1712 = vld [vmem:[#allocation20] sm:$0xff]
    %v1713 = vld [vmem:[#allocation20 + $0x8] sm:$0xff]
    %v1714 = vld [vmem:[#allocation20 + $0x10] sm:$0xff]
    %v1715 = vld [vmem:[#allocation20 + $0x18] sm:$0xff]
    %v1716 = vld [vmem:[#allocation20 + $0x20] sm:$0xff]
    %v1717 = vld [vmem:[#allocation20 + $0x28] sm:$0xff]
    %v1718 = vld [vmem:[#allocation20 + $0x30] sm:$0xff]
    %v1719 = vld [vmem:[#allocation20 + $0x38] sm:$0xff]
    %v1720 = vld [vmem:[#allocation20 + $0x40] sm:$0xff]
    %v1721 = vld [vmem:[#allocation20 + $0x48] sm:$0xff]
    %v1722 = vld [vmem:[#allocation20 + $0x50] sm:$0xff]
    %v1723 = vld [vmem:[#allocation20 + $0x58] sm:$0xff]
    %v1724 = vld [vmem:[#allocation20 + $0x60] sm:$0xff]
    %v1725 = vld [vmem:[#allocation20 + $0x68] sm:$0xff]
    %v1726 = vld [vmem:[#allocation20 + $0x70] sm:$0xff]
    %v1727 = vld [vmem:[#allocation20 + $0x78] sm:$0xff]
    %v1728 = vld [vmem:[%s15] sm:$0x1]
    %1729 = vmatprep.subr.mxu0 0.0
    %1730 = vmatpush1.msra.mxu0 %v1712
    %1731 = vmatprep.subr.mxu0 0.0
    %1732 = vmatpush1.msra.mxu0 %v1713
    %1733 = vmatprep.subr.mxu0 0.0
    %1734 = vmatpush1.msra.mxu0 %v1714
    %1735 = vmatprep.subr.mxu0 0.0
    %1736 = vmatpush1.msra.mxu0 %v1715
    %1737 = vmatprep.subr.mxu0 0.0
    %1738 = vmatpush1.msra.mxu0 %v1716
    %1739 = vmatprep.subr.mxu0 0.0
    %1740 = vmatpush1.msra.mxu0 %v1717
    %1741 = vmatprep.subr.mxu0 0.0
    %1742 = vmatpush1.msra.mxu0 %v1718
    %1743 = vmatprep.subr.mxu0 0.0
    %1744 = vmatpush1.msra.mxu0 %v1719
    %1745 = vmatprep.subr.mxu0 0.0
    %1746 = vmatpush1.msra.mxu0 %v1720
    %1747 = vmatprep.subr.mxu0 0.0
    %1748 = vmatpush1.msra.mxu0 %v1721
    %1749 = vmatprep.subr.mxu0 0.0
    %1750 = vmatpush1.msra.mxu0 %v1722
    %1751 = vmatprep.subr.mxu0 0.0
    %1752 = vmatpush1.msra.mxu0 %v1723
    %1753 = vmatprep.subr.mxu0 0.0
    %1754 = vmatpush1.msra.mxu0 %v1724
    %1755 = vmatprep.subr.mxu0 0.0
    %1756 = vmatpush1.msra.mxu0 %v1725
    %1757 = vmatprep.subr.mxu0 0.0
    %1758 = vmatpush1.msra.mxu0 %v1726
    %1759 = vmatprep.subr.mxu0 0.0
    %1760 = vmatpush1.msra.mxu0 %v1727
    %1761 = vmatprep.subr.mxu0 0.0
    %1762 = vmatpush1.msra.mxu0 0.0
    %1763 = vmatprep.subr.mxu0 0.0
    %1764 = vmatpush1.msra.mxu0 0.0
    %1765 = vmatprep.subr.mxu0 0.0
    %1766 = vmatpush1.msra.mxu0 0.0
    %1767 = vmatprep.subr.mxu0 0.0
    %1768 = vmatpush1.msra.mxu0 0.0
    %1769 = vmatprep.subr.mxu0 0.0
    %1770 = vmatpush1.msra.mxu0 0.0
    %1771 = vmatprep.subr.mxu0 0.0
    %1772 = vmatpush1.msra.mxu0 0.0
    %1773 = vmatprep.subr.mxu0 0.0
    %1774 = vmatpush1.msra.mxu0 0.0
    %1775 = vmatprep.subr.mxu0 0.0
    %1776 = vmatpush1.msra.mxu0 0.0
    %1777 = vmatprep.subr.mxu0 0.0
    %1778 = vmatpush1.msra.mxu0 0.0
    %1779 = vmatprep.subr.mxu0 0.0
    %1780 = vmatpush1.msra.mxu0 0.0
    %1781 = vmatprep.subr.mxu0 0.0
    %1782 = vmatpush1.msra.mxu0 0.0
    %1783 = vmatprep.subr.mxu0 0.0
    %1784 = vmatpush1.msra.mxu0 0.0
    %1785 = vmatprep.subr.mxu0 0.0
    %1786 = vmatpush1.msra.mxu0 0.0
    %1787 = vmatprep.subr.mxu0 0.0
    %1788 = vmatpush1.msra.mxu0 0.0
    %1789 = vmatprep.subr.mxu0 0.0
    %1790 = vmatpush1.msra.mxu0 0.0
    %1791 = vmatprep.subr.mxu0 0.0
    %1792 = vmatpush1.msra.mxu0 0.0
    %1793 = vmatprep.mubr.f32.mxu0 0.0
    %1794 = vmatmul.mubr.f32.gmra.mrb[0].mxu0 %v1711
    %v1795 = vpop.f32.mrb[0].mxu0
    %v1796 = vadd.f32 %v1728, %v1795
    %v1797 = vpop.f32.mrb[0].mxu0
    %1798 = vdwg.mxu0
    %1799 = vst [vmem:[#allocation22] sm:$0x1] %v1796
    // Predicated region
    $region144: #{gnn_softmask_forward.1} parent=1 // pred_check
      _
    $region145: #{gnn_softmask_forward.1} parent=1 // pred_check_branch
      %1801 = sbr.rel (0) target = $region147
    $region146: #{gnn_softmask_forward.1} parent=1 // pred_region
      %s1803 = ssub.s32 128, 128
      %1804 = vsyncadd [#allocation7], %s1803
      %s1806 = sshll.u32 [#allocation21], 4
      %s1807 = int_to_ptr.vmem [resolvable:$true] %s1806
      %1809 = dma.vmem_to_hbm [thread:$0]  %s1807, 128, %s16, [#allocation7]
    $region147: #{gnn_softmask_forward.1} parent=1 // pred_fallthru
      _
    // Predicated region
    $region148: #{gnn_softmask_forward.1} parent=1 // pred_check
      _
    $region149: #{gnn_softmask_forward.1} parent=1 // pred_check_branch
      %1811 = sbr.rel (0) target = $region151
    $region150: #{gnn_softmask_forward.1} parent=1 // pred_region
      _
    $region151: #{gnn_softmask_forward.1} parent=1 // pred_fallthru
      _
    // Predicated region
    $region152: #{gnn_softmask_forward.1} parent=1 // pred_check
      _
    $region153: #{gnn_softmask_forward.1} parent=1 // pred_check_branch
      %1813 = sbr.rel (0) target = $region155
    $region154: #{gnn_softmask_forward.1} parent=1 // pred_region
      %s1815 = ssub.s32 16, 16
      %1816 = vsyncadd [#allocation23], %s1815
      %s1818 = sshll.u32 [#allocation22], 4
      %s1819 = int_to_ptr.vmem [resolvable:$true] %s1818
      %1821 = dma.vmem_to_hbm [thread:$0]  %s1819, 16, %s18, [#allocation23]
    $region155: #{gnn_softmask_forward.1} parent=1 // pred_fallthru
      _
    // Predicated region
    $region156: #{gnn_softmask_forward.1} parent=1 // pred_check
      _
    $region157: #{gnn_softmask_forward.1} parent=1 // pred_check_branch
      %1823 = sbr.rel (0) target = $region159
    $region158: #{gnn_softmask_forward.1} parent=1 // pred_region
      %1824 = dma.done [#allocation7], 128
    $region159: #{gnn_softmask_forward.1} parent=1 // pred_fallthru
      _
    // Predicated region
    $region160: #{gnn_softmask_forward.1} parent=1 // pred_check
      _
    $region161: #{gnn_softmask_forward.1} parent=1 // pred_check_branch
      %1826 = sbr.rel (0) target = $region163
    $region162: #{gnn_softmask_forward.1} parent=1 // pred_region
      _
    $region163: #{gnn_softmask_forward.1} parent=1 // pred_fallthru
      _
    // Predicated region
    $region164: #{gnn_softmask_forward.1} parent=1 // pred_check
      _
    $region165: #{gnn_softmask_forward.1} parent=1 // pred_check_branch
      %1828 = sbr.rel (0) target = $region167
    $region166: #{gnn_softmask_forward.1} parent=1 // pred_region
      %1829 = dma.done [#allocation23], 16
    $region167: #{gnn_softmask_forward.1} parent=1 // pred_fallthru
      _
    %1830 = vsyncpa [#allocation6], 1
    %1831 = vsyncpa [#allocation13], 1
    %1832 = vsyncpa [#allocation16], 1
    %1833 = vsyncpa [#allocation19], 1
    %1834 = vsyncpa [#allocation7], 1
    %1835 = vsyncpa [#allocation23], 1
    %1836 = vsyncpa [#allocation8], 1
    %1837 = vsyncpa [#allocation10], 1

</llo_original>
